<compile_context>
chip_gen: v5e
topology: v5e:2x2
jax: 0.10.0
libtpu: 0.0.40
codegen_flags: <defaults>
</compile_context>

<pallas_src>
import jax
import jax.numpy as jnp
from jax.experimental import pallas as pl
from jax.experimental.pallas import tpu as pltpu


def _silu(x):
    # exp maps to the EUP slot; keep elementwise math in f32.
    return x * (1.0 / (1.0 + jnp.exp(-x)))


# --------------------------------------------------------------------------- #
# Pallas kernel: fused ResBlock forward for one batch element per grid step.
# --------------------------------------------------------------------------- #
def _resblock_kernel(x_ref, temb_ref, w1_ref, b1_ref, wt_ref, bt_ref,
                     w2_ref, b2_ref, ws_ref, bs_ref, out_ref,
                     pad1_ref, pad2_ref, col1_ref, col2_ref):
    """
    x_ref   : (1, H*Wo, 2*Cin)  rows regrouped so the two W-neighbours of every
                                pooled pixel are adjacent on the lane dim
    temb_ref: (1, 1, Tc)
    w1_ref  : (9*Cin,  Cout)    conv1 im2col weight (tap-major), spectral-normed
    w2_ref  : (9*Cout, Cout)    conv2 im2col weight, spectral-normed
    wt_ref  : (Tc, Cout)        time-embedding projection, spectral-normed
    ws_ref  : (Cin, Cout)       1x1 shortcut conv
    b*_ref  : (1, Cout)
    out_ref : (1, Cout, Ho*Wo)  NCHW-flat output block
    pad*_ref: zero-border padded conv inputs (VMEM scratch)
    col*_ref: im2col slabs (VMEM scratch) -> one MXU matmul per conv
    """
    ho = pad1_ref.shape[0] - 2
    wo = pad1_ref.shape[1] - 2
    cin = pad1_ref.shape[2]
    cout = out_ref.shape[1]
    hw = ho * wo
    mm_dtype = w1_ref.dtype  # f32 by default, bf16 for the v6e/v7x MXU path

    # ---- Downsample2D (AvgPool2d 2x2, stride 2) -----------------------------
    # Only contiguous lane slices + tile-aligned reshapes; no strided gathers.
    x2 = x_ref[0]                                   # (H*Wo, 2*Cin)
    wpair = x2[:, :cin] + x2[:, cin:]               # sum over W-parity
    w4 = wpair.reshape(ho, 2, wo, cin)              # split H into (Ho, 2)
    xd = (w4[:, 0] + w4[:, 1]) * 0.25               # (Ho, Wo, Cin)

    # ---- conv1 (3x3, pad 1): border-zero pad -> im2col -> single MXU matmul --
    # Only the 1-wide border is zeroed; the interior is fully rewritten below.
    pad1_ref[0:1, :, :] = jnp.zeros((1, wo + 2, cin), jnp.float32)
    pad1_ref[ho + 1:ho + 2, :, :] = jnp.zeros((1, wo + 2, cin), jnp.float32)
    pad1_ref[:, 0:1, :] = jnp.zeros((ho + 2, 1, cin), jnp.float32)
    pad1_ref[:, wo + 1:wo + 2, :] = jnp.zeros((ho + 2, 1, cin), jnp.float32)
    pad1_ref[1:ho + 1, 1:wo + 1, :] = xd

    for dy in range(3):
        for dx in range(3):
            t = dy * 3 + dx
            col1_ref[:, :, t * cin:(t + 1) * cin] = \
                pad1_ref[dy:dy + ho, dx:dx + wo, :]
    col1 = col1_ref[...].reshape(hw, 9 * cin)
    acc1 = jnp.dot(col1.astype(mm_dtype), w1_ref[...],
                   preferred_element_type=jnp.float32)
    h = _silu(acc1 + b1_ref[...])                   # (HW, Cout), f32

    # ---- time embedding: silu -> spectral-normed linear -> broadcast add ----
    t_act = _silu(temb_ref[0])                      # (1, Tc)
    tproj = jnp.dot(t_act.astype(mm_dtype), wt_ref[...],
                    preferred_element_type=jnp.float32) + bt_ref[...]
    h = h + tproj                                   # broadcast over rows

    # ---- conv2 (3x3, pad 1) --------------------------------------------------
    pad2_ref[0:1, :, :] = jnp.zeros((1, wo + 2, cout), jnp.float32)
    pad2_ref[ho + 1:ho + 2, :, :] = jnp.zeros((1, wo + 2, cout), jnp.float32)
    pad2_ref[:, 0:1, :] = jnp.zeros((ho + 2, 1, cout), jnp.float32)
    pad2_ref[:, wo + 1:wo + 2, :] = jnp.zeros((ho + 2, 1, cout), jnp.float32)
    pad2_ref[1:ho + 1, 1:wo + 1, :] = h.reshape(ho, wo, cout)

    for dy in range(3):
        for dx in range(3):
            t = dy * 3 + dx
            col2_ref[:, :, t * cout:(t + 1) * cout] = \
                pad2_ref[dy:dy + ho, dx:dx + wo, :]
    col2 = col2_ref[...].reshape(hw, 9 * cout)
    acc2 = jnp.dot(col2.astype(mm_dtype), w2_ref[...],
                   preferred_element_type=jnp.float32)
    h2 = _silu(acc2 + b2_ref[...])

    # ---- 1x1 shortcut conv + residual add ------------------------------------
    sc = jnp.dot(xd.reshape(hw, cin).astype(mm_dtype), ws_ref[...],
                 preferred_element_type=jnp.float32) + bs_ref[...]
    out = sc + h2                                   # (HW, Cout)

    # Store NCHW-flat: (Cout, Ho*Wo) -> denser lanes than Cout-on-lanes and no
    # wrapper-side output transpose (saves an HBM pass).
    out_ref[0] = out.T.astype(out_ref.dtype)


# --------------------------------------------------------------------------- #
# Wrapper: layout glue + pallas_call
# --------------------------------------------------------------------------- #
def spectral_norm_resblock_pallas(x_nchw, temb, params, *, mm_dtype=jnp.float32):
    n, cin, h, w = x_nchw.shape
    cout = params["b1"].shape[0]
    tc = temb.shape[1]
    ho, wo = h // 2, w // 2
    hw = ho * wo

    # NCHW -> NHWC, then regroup rows as (H*Wo, 2*Cin) (a free reshape of the
    # contiguous NHWC view) so the in-kernel pooling needs no strided gathers.
    # No stacked "corners" intermediate is materialized in HBM anymore.
    x_rows = jnp.transpose(x_nchw, (0, 2, 3, 1)).reshape(n, h * wo, 2 * cin)

    # OIHW conv weights -> im2col matrices; row index = (dy*3+dx)*C + c to
    # match the in-kernel im2col slab layout.
    w1 = jnp.transpose(params["w1_sn"], (2, 3, 1, 0)).reshape(9 * cin, cout)
    w2 = jnp.transpose(params["w2_sn"], (2, 3, 1, 0)).reshape(9 * cout, cout)
    wt = params["wt_sn"].T                       # (Tc, Cout)
    ws = params["ws"][:, :, 0, 0].T              # (Cin, Cout)
    w1 = w1.astype(mm_dtype)
    w2 = w2.astype(mm_dtype)
    wt = wt.astype(mm_dtype)
    ws = ws.astype(mm_dtype)
    b1 = params["b1"].reshape(1, cout).astype(jnp.float32)
    b2 = params["b2"].reshape(1, cout).astype(jnp.float32)
    bt = params["bt"].reshape(1, cout).astype(jnp.float32)
    bs = params["bs"].reshape(1, cout).astype(jnp.float32)
    temb3 = temb.reshape(n, 1, tc)

    out = pl.pallas_call(
        _resblock_kernel,
        out_shape=jax.ShapeDtypeStruct((n, cout, hw), jnp.float32),
        grid=(n,),
        in_specs=[
            pl.BlockSpec((1, h * wo, 2 * cin), lambda i: (i, 0, 0)),
            pl.BlockSpec((1, 1, tc), lambda i: (i, 0, 0)),
            # grid-invariant weights / biases
            pl.BlockSpec((9 * cin, cout), lambda i: (0, 0)),
            pl.BlockSpec((1, cout), lambda i: (0, 0)),
            pl.BlockSpec((tc, cout), lambda i: (0, 0)),
            pl.BlockSpec((1, cout), lambda i: (0, 0)),
            pl.BlockSpec((9 * cout, cout), lambda i: (0, 0)),
            pl.BlockSpec((1, cout), lambda i: (0, 0)),
            pl.BlockSpec((cin, cout), lambda i: (0, 0)),
            pl.BlockSpec((1, cout), lambda i: (0, 0)),
        ],
        out_specs=pl.BlockSpec((1, cout, hw), lambda i: (i, 0, 0)),
        scratch_shapes=[
            pltpu.VMEM((ho + 2, wo + 2, cin), jnp.float32),    # pad1
            pltpu.VMEM((ho + 2, wo + 2, cout), jnp.float32),   # pad2
            pltpu.VMEM((ho, wo, 9 * cin), jnp.float32),        # im2col conv1
            pltpu.VMEM((ho, wo, 9 * cout), jnp.float32),       # im2col conv2
        ],
        # Batch axis is fully independent -> "parallel" (v7x: 2 TensorCores).
        # Scratch is re-initialized (border only) every step, so no state is
        # carried across the parallel axis.
        compiler_params=pltpu.CompilerParams(
            dimension_semantics=("parallel",)),
    )(x_rows, temb3, w1, b1, wt, bt, w2, b2, ws, bs)

    return out.reshape(n, cout, ho, wo)   # free reshape, already NCHW order


# --------------------------------------------------------------------------- #
# Parameter setup (deterministic) + torch-style spectral norm (plain JAX glue)
# --------------------------------------------------------------------------- #
def _l2_normalize(v, eps):
    return v / jnp.maximum(jnp.linalg.norm(v), eps)


def _spectral_normalize(w, key, eps=1e-8, n_power_iterations=1):
    # torch.nn.utils.spectral_norm semantics: power iteration on the
    # (out, -1)-reshaped weight, then divide by sigma = u^T W v.
    w_mat = w.reshape(w.shape[0], -1)
    u = _l2_normalize(jax.random.normal(key, (w_mat.shape[0],), jnp.float32), eps)
    v = None
    for _ in range(n_power_iterations):
        v = _l2_normalize(w_mat.T @ u, eps)
        u = _l2_normalize(w_mat @ v, eps)
    sigma = u @ (w_mat @ v)
    return w / sigma


def make_params(key, in_channels, out_channels, temb_channels):
    ks = jax.random.split(key, 12)
    w1 = 0.2 * jax.random.normal(ks[0], (out_channels, in_channels, 3, 3), jnp.float32)
    b1 = 0.1 * jax.random.normal(ks[1], (out_channels,), jnp.float32)
    w2 = 0.2 * jax.random.normal(ks[2], (out_channels, out_channels, 3, 3), jnp.float32)
    b2 = 0.1 * jax.random.normal(ks[3], (out_channels,), jnp.float32)
    wt = 0.2 * jax.random.normal(ks[4], (out_channels, temb_channels), jnp.float32)
    bt = 0.1 * jax.random.normal(ks[5], (out_channels,), jnp.float32)
    ws = 0.2 * jax.random.normal(ks[6], (out_channels, in_channels, 1, 1), jnp.float32)
    bs = 0.1 * jax.random.normal(ks[7], (out_channels,), jnp.float32)
    return dict(
        w1_sn=_spectral_normalize(w1, ks[8]),
        w2_sn=_spectral_normalize(w2, ks[9]),
        wt_sn=_spectral_normalize(wt, ks[10]),
        b1=b1, b2=b2, bt=bt, ws=ws, bs=bs,
    )


# --------------------------------------------------------------------------- #
# Pure-JAX reference (mirrors the PyTorch forward, NCHW)
# --------------------------------------------------------------------------- #
def reference_forward(x, temb, p):
    xd = 0.25 * (x[:, :, 0::2, 0::2] + x[:, :, 0::2, 1::2]
                 + x[:, :, 1::2, 0::2] + x[:, :, 1::2, 1::2])

    def conv(z, w, b, pad):
        y = jax.lax.conv_general_dilated(
            z, w, window_strides=(1, 1), padding=[(pad, pad), (pad, pad)],
            dimension_numbers=("NCHW", "OIHW", "NCHW"))
        return y + b[None, :, None, None]

    h = _silu(conv(xd, p["w1_sn"], p["b1"], 1))
    t = _silu(temb) @ p["wt_sn"].T + p["bt"]
    h = h + t[:, :, None, None]
    h = _silu(conv(h, p["w2_sn"], p["b2"], 1))
    sc = conv(xd, p["ws"], p["bs"], 0)
    return sc + h


if __name__ == "__main__":
    N, Cin, Cout, Tc, H, W = 2, 4, 8, 32, 16, 16
    key = jax.random.PRNGKey(0)
    kx, kt, kp = jax.random.split(key, 3)
    x = jax.random.normal(kx, (N, Cin, H, W), jnp.float32)
    temb = jax.random.normal(kt, (N, Tc), jnp.float32)
    params = make_params(kp, Cin, Cout, Tc)

    ref = reference_forward(x, temb, params)

    # f32 path (default): bit-faithful to the PyTorch module up to reordering.
    out = jax.block_until_ready(spectral_norm_resblock_pallas(x, temb, params))
    assert out.shape == (N, Cout, H // 2, W // 2), out.shape
    err = float(jnp.max(jnp.abs(out - ref)))
    assert err < 1e-3, f"f32 path: max abs error {err}"

    # bf16-MXU path (v6e/v7x perf feedback): only the matmul operands are cast;
    # accumulation and all elementwise math stay in f32.
    out_bf16 = jax.block_until_ready(
        spectral_norm_resblock_pallas(x, temb, params, mm_dtype=jnp.bfloat16))
    err_bf16 = float(jnp.max(jnp.abs(out_bf16 - ref)))
    assert err_bf16 < 3e-2, f"bf16 path: max abs error {err_bf16}"

    print("KERNEL_OK")
</pallas_src>

<mosaic_0001>
module attributes {stable_mosaic.version = 11 : i64} {
  func.func @_resblock_kernel(%arg0: i32, %arg1: memref<1x128x8xf32, #tpu.memory_space<vmem>>, %arg2: memref<1x1x32xf32, #tpu.memory_space<vmem>>, %arg3: memref<36x8xf32, #tpu.memory_space<vmem>>, %arg4: memref<1x8xf32, #tpu.memory_space<vmem>>, %arg5: memref<32x8xf32, #tpu.memory_space<vmem>>, %arg6: memref<1x8xf32, #tpu.memory_space<vmem>>, %arg7: memref<72x8xf32, #tpu.memory_space<vmem>>, %arg8: memref<1x8xf32, #tpu.memory_space<vmem>>, %arg9: memref<4x8xf32, #tpu.memory_space<vmem>>, %arg10: memref<1x8xf32, #tpu.memory_space<vmem>>, %arg11: memref<1x8x64xf32, #tpu.memory_space<vmem>>, %arg12: memref<10x10x4xf32, #tpu.memory_space<vmem>>, %arg13: memref<10x10x8xf32, #tpu.memory_space<vmem>>, %arg14: memref<8x8x36xf32, #tpu.memory_space<vmem>>, %arg15: memref<8x8x72xf32, #tpu.memory_space<vmem>>) attributes {dimension_semantics = [#tpu.dimension_semantics<parallel>], iteration_bounds = array<i64: 2>, scalar_prefetch = 0 : i64, scratch_operands = 4 : i64, tpu.core_type = #tpu.core_type<tc>, window_params = [{transform_indices = @transform_0, window_bounds = array<i64: 1, 128, 8>}, {transform_indices = @transform_1, window_bounds = array<i64: 1, 1, 32>}, {pipeline_mode = #tpu.pipeline_mode<synchronous>, transform_indices = @transform_2, window_bounds = array<i64: 36, 8>}, {pipeline_mode = #tpu.pipeline_mode<synchronous>, transform_indices = @transform_3, window_bounds = array<i64: 1, 8>}, {pipeline_mode = #tpu.pipeline_mode<synchronous>, transform_indices = @transform_4, window_bounds = array<i64: 32, 8>}, {pipeline_mode = #tpu.pipeline_mode<synchronous>, transform_indices = @transform_5, window_bounds = array<i64: 1, 8>}, {pipeline_mode = #tpu.pipeline_mode<synchronous>, transform_indices = @transform_6, window_bounds = array<i64: 72, 8>}, {pipeline_mode = #tpu.pipeline_mode<synchronous>, transform_indices = @transform_7, window_bounds = array<i64: 1, 8>}, {pipeline_mode = #tpu.pipeline_mode<synchronous>, transform_indices = @transform_8, window_bounds = array<i64: 4, 8>}, {pipeline_mode = #tpu.pipeline_mode<synchronous>, transform_indices = @transform_9, window_bounds = array<i64: 1, 8>}, {transform_indices = @transform_10, window_bounds = array<i64: 1, 8, 64>}]} {
    %c0 = arith.constant 0 : index
    %c0_0 = arith.constant 0 : index
    %c0_1 = arith.constant 0 : index
    %0 = vector.load %arg1[%c0, %c0_0, %c0_1] : memref<1x128x8xf32, #tpu.memory_space<vmem>>, vector<1x128x8xf32>
    %1 = vector.shape_cast %0 : vector<1x128x8xf32> to vector<128x8xf32>
    %2 = vector.extract_strided_slice %1 {offsets = [0, 0], sizes = [128, 4], strides = [1, 1]} : vector<128x8xf32> to vector<128x4xf32>
    %3 = vector.extract_strided_slice %1 {offsets = [0, 4], sizes = [128, 4], strides = [1, 1]} : vector<128x8xf32> to vector<128x4xf32>
    %4 = arith.addf %2, %3 : vector<128x4xf32>
    %5 = vector.shape_cast %4 : vector<128x4xf32> to vector<8x2x8x4xf32>
    %6 = vector.extract_strided_slice %5 {offsets = [0, 0, 0, 0], sizes = [8, 1, 8, 4], strides = [1, 1, 1, 1]} : vector<8x2x8x4xf32> to vector<8x1x8x4xf32>
    %7 = vector.shape_cast %6 : vector<8x1x8x4xf32> to vector<8x8x4xf32>
    %8 = vector.extract_strided_slice %5 {offsets = [0, 1, 0, 0], sizes = [8, 1, 8, 4], strides = [1, 1, 1, 1]} : vector<8x2x8x4xf32> to vector<8x1x8x4xf32>
    %9 = vector.shape_cast %8 : vector<8x1x8x4xf32> to vector<8x8x4xf32>
    %10 = arith.addf %7, %9 : vector<8x8x4xf32>
    %cst = arith.constant 2.500000e-01 : f32
    %11 = vector.broadcast %cst : f32 to vector<8x8x4xf32>
    %12 = arith.mulf %10, %11 : vector<8x8x4xf32>
    %cst_2 = arith.constant 0.000000e+00 : f32
    %13 = vector.broadcast %cst_2 : f32 to vector<1x10x4xf32>
    %c0_3 = arith.constant 0 : index
    %c0_4 = arith.constant 0 : index
    %c0_5 = arith.constant 0 : index
    %14 = vector.load %arg12[%c0_3, %c0_4, %c0_5] : memref<10x10x4xf32, #tpu.memory_space<vmem>>, vector<1x10x4xf32>
    tpu.vector_store %arg12[%c0_3, %c0_4, %c0_5], %13 {strides = array<i32>} : memref<10x10x4xf32, #tpu.memory_space<vmem>>, vector<1x10x4xf32>,
    %cst_6 = arith.constant 0.000000e+00 : f32
    %15 = vector.broadcast %cst_6 : f32 to vector<1x10x4xf32>
    %c9 = arith.constant 9 : index
    %c0_7 = arith.constant 0 : index
    %c0_8 = arith.constant 0 : index
    %16 = vector.load %arg12[%c9, %c0_7, %c0_8] : memref<10x10x4xf32, #tpu.memory_space<vmem>>, vector<1x10x4xf32>
    tpu.vector_store %arg12[%c9, %c0_7, %c0_8], %15 {strides = array<i32>} : memref<10x10x4xf32, #tpu.memory_space<vmem>>, vector<1x10x4xf32>,
    %cst_9 = arith.constant 0.000000e+00 : f32
    %17 = vector.broadcast %cst_9 : f32 to vector<10x1x4xf32>
    %c0_10 = arith.constant 0 : index
    %c0_11 = arith.constant 0 : index
    %c0_12 = arith.constant 0 : index
    %18 = vector.load %arg12[%c0_10, %c0_11, %c0_12] : memref<10x10x4xf32, #tpu.memory_space<vmem>>, vector<10x1x4xf32>
    tpu.vector_store %arg12[%c0_10, %c0_11, %c0_12], %17 {strides = array<i32>} : memref<10x10x4xf32, #tpu.memory_space<vmem>>, vector<10x1x4xf32>,
    %cst_13 = arith.constant 0.000000e+00 : f32
    %19 = vector.broadcast %cst_13 : f32 to vector<10x1x4xf32>
    %c0_14 = arith.constant 0 : index
    %c9_15 = arith.constant 9 : index
    %c0_16 = arith.constant 0 : index
    %20 = vector.load %arg12[%c0_14, %c9_15, %c0_16] : memref<10x10x4xf32, #tpu.memory_space<vmem>>, vector<10x1x4xf32>
    tpu.vector_store %arg12[%c0_14, %c9_15, %c0_16], %19 {strides = array<i32>} : memref<10x10x4xf32, #tpu.memory_space<vmem>>, vector<10x1x4xf32>,
    %c1 = arith.constant 1 : index
    %c1_17 = arith.constant 1 : index
    %c0_18 = arith.constant 0 : index
    %21 = vector.load %arg12[%c1, %c1_17, %c0_18] : memref<10x10x4xf32, #tpu.memory_space<vmem>>, vector<8x8x4xf32>
    tpu.vector_store %arg12[%c1, %c1_17, %c0_18], %12 {strides = array<i32>} : memref<10x10x4xf32, #tpu.memory_space<vmem>>, vector<8x8x4xf32>,
    %c0_19 = arith.constant 0 : index
    %c0_20 = arith.constant 0 : index
    %c0_21 = arith.constant 0 : index
    %22 = vector.load %arg12[%c0_19, %c0_20, %c0_21] : memref<10x10x4xf32, #tpu.memory_space<vmem>>, vector<8x8x4xf32>
    %c0_22 = arith.constant 0 : index
    %c0_23 = arith.constant 0 : index
    %c0_24 = arith.constant 0 : index
    %23 = vector.load %arg14[%c0_22, %c0_23, %c0_24] : memref<8x8x36xf32, #tpu.memory_space<vmem>>, vector<8x8x4xf32>
    tpu.vector_store %arg14[%c0_22, %c0_23, %c0_24], %22 {strides = array<i32>} : memref<8x8x36xf32, #tpu.memory_space<vmem>>, vector<8x8x4xf32>,
    %c0_25 = arith.constant 0 : index
    %c1_26 = arith.constant 1 : index
    %c0_27 = arith.constant 0 : index
    %24 = vector.load %arg12[%c0_25, %c1_26, %c0_27] : memref<10x10x4xf32, #tpu.memory_space<vmem>>, vector<8x8x4xf32>
    %c0_28 = arith.constant 0 : index
    %c0_29 = arith.constant 0 : index
    %c4 = arith.constant 4 : index
    %25 = vector.load %arg14[%c0_28, %c0_29, %c4] : memref<8x8x36xf32, #tpu.memory_space<vmem>>, vector<8x8x4xf32>
    tpu.vector_store %arg14[%c0_28, %c0_29, %c4], %24 {strides = array<i32>} : memref<8x8x36xf32, #tpu.memory_space<vmem>>, vector<8x8x4xf32>,
    %c0_30 = arith.constant 0 : index
    %c2 = arith.constant 2 : index
    %c0_31 = arith.constant 0 : index
    %26 = vector.load %arg12[%c0_30, %c2, %c0_31] : memref<10x10x4xf32, #tpu.memory_space<vmem>>, vector<8x8x4xf32>
    %c0_32 = arith.constant 0 : index
    %c0_33 = arith.constant 0 : index
    %c8 = arith.constant 8 : index
    %27 = vector.load %arg14[%c0_32, %c0_33, %c8] : memref<8x8x36xf32, #tpu.memory_space<vmem>>, vector<8x8x4xf32>
    tpu.vector_store %arg14[%c0_32, %c0_33, %c8], %26 {strides = array<i32>} : memref<8x8x36xf32, #tpu.memory_space<vmem>>, vector<8x8x4xf32>,
    %c1_34 = arith.constant 1 : index
    %c0_35 = arith.constant 0 : index
    %c0_36 = arith.constant 0 : index
    %28 = vector.load %arg12[%c1_34, %c0_35, %c0_36] : memref<10x10x4xf32, #tpu.memory_space<vmem>>, vector<8x8x4xf32>
    %c0_37 = arith.constant 0 : index
    %c0_38 = arith.constant 0 : index
    %c12 = arith.constant 12 : index
    %29 = vector.load %arg14[%c0_37, %c0_38, %c12] : memref<8x8x36xf32, #tpu.memory_space<vmem>>, vector<8x8x4xf32>
    tpu.vector_store %arg14[%c0_37, %c0_38, %c12], %28 {strides = array<i32>} : memref<8x8x36xf32, #tpu.memory_space<vmem>>, vector<8x8x4xf32>,
    %c1_39 = arith.constant 1 : index
    %c1_40 = arith.constant 1 : index
    %c0_41 = arith.constant 0 : index
    %30 = vector.load %arg12[%c1_39, %c1_40, %c0_41] : memref<10x10x4xf32, #tpu.memory_space<vmem>>, vector<8x8x4xf32>
    %c0_42 = arith.constant 0 : index
    %c0_43 = arith.constant 0 : index
    %c16 = arith.constant 16 : index
    %31 = vector.load %arg14[%c0_42, %c0_43, %c16] : memref<8x8x36xf32, #tpu.memory_space<vmem>>, vector<8x8x4xf32>
    tpu.vector_store %arg14[%c0_42, %c0_43, %c16], %30 {strides = array<i32>} : memref<8x8x36xf32, #tpu.memory_space<vmem>>, vector<8x8x4xf32>,
    %c1_44 = arith.constant 1 : index
    %c2_45 = arith.constant 2 : index
    %c0_46 = arith.constant 0 : index
    %32 = vector.load %arg12[%c1_44, %c2_45, %c0_46] : memref<10x10x4xf32, #tpu.memory_space<vmem>>, vector<8x8x4xf32>
    %c0_47 = arith.constant 0 : index
    %c0_48 = arith.constant 0 : index
    %c20 = arith.constant 20 : index
    %33 = vector.load %arg14[%c0_47, %c0_48, %c20] : memref<8x8x36xf32, #tpu.memory_space<vmem>>, vector<8x8x4xf32>
    tpu.vector_store %arg14[%c0_47, %c0_48, %c20], %32 {strides = array<i32>} : memref<8x8x36xf32, #tpu.memory_space<vmem>>, vector<8x8x4xf32>,
    %c2_49 = arith.constant 2 : index
    %c0_50 = arith.constant 0 : index
    %c0_51 = arith.constant 0 : index
    %34 = vector.load %arg12[%c2_49, %c0_50, %c0_51] : memref<10x10x4xf32, #tpu.memory_space<vmem>>, vector<8x8x4xf32>
    %c0_52 = arith.constant 0 : index
    %c0_53 = arith.constant 0 : index
    %c24 = arith.constant 24 : index
    %35 = vector.load %arg14[%c0_52, %c0_53, %c24] : memref<8x8x36xf32, #tpu.memory_space<vmem>>, vector<8x8x4xf32>
    tpu.vector_store %arg14[%c0_52, %c0_53, %c24], %34 {strides = array<i32>} : memref<8x8x36xf32, #tpu.memory_space<vmem>>, vector<8x8x4xf32>,
    %c2_54 = arith.constant 2 : index
    %c1_55 = arith.constant 1 : index
    %c0_56 = arith.constant 0 : index
    %36 = vector.load %arg12[%c2_54, %c1_55, %c0_56] : memref<10x10x4xf32, #tpu.memory_space<vmem>>, vector<8x8x4xf32>
    %c0_57 = arith.constant 0 : index
    %c0_58 = arith.constant 0 : index
    %c28 = arith.constant 28 : index
    %37 = vector.load %arg14[%c0_57, %c0_58, %c28] : memref<8x8x36xf32, #tpu.memory_space<vmem>>, vector<8x8x4xf32>
    tpu.vector_store %arg14[%c0_57, %c0_58, %c28], %36 {strides = array<i32>} : memref<8x8x36xf32, #tpu.memory_space<vmem>>, vector<8x8x4xf32>,
    %c2_59 = arith.constant 2 : index
    %c2_60 = arith.constant 2 : index
    %c0_61 = arith.constant 0 : index
    %38 = vector.load %arg12[%c2_59, %c2_60, %c0_61] : memref<10x10x4xf32, #tpu.memory_space<vmem>>, vector<8x8x4xf32>
    %c0_62 = arith.constant 0 : index
    %c0_63 = arith.constant 0 : index
    %c32 = arith.constant 32 : index
    %39 = vector.load %arg14[%c0_62, %c0_63, %c32] : memref<8x8x36xf32, #tpu.memory_space<vmem>>, vector<8x8x4xf32>
    tpu.vector_store %arg14[%c0_62, %c0_63, %c32], %38 {strides = array<i32>} : memref<8x8x36xf32, #tpu.memory_space<vmem>>, vector<8x8x4xf32>,
    %c0_64 = arith.constant 0 : index
    %c0_65 = arith.constant 0 : index
    %c0_66 = arith.constant 0 : index
    %40 = vector.load %arg14[%c0_64, %c0_65, %c0_66] : memref<8x8x36xf32, #tpu.memory_space<vmem>>, vector<8x8x36xf32>
    %41 = vector.shape_cast %40 : vector<8x8x36xf32> to vector<64x36xf32>
    %c0_67 = arith.constant 0 : index
    %c0_68 = arith.constant 0 : index
    %42 = vector.load %arg3[%c0_67, %c0_68] : memref<36x8xf32, #tpu.memory_space<vmem>>, vector<36x8xf32>
    %cst_69 = arith.constant dense<0.000000e+00> : vector<64x8xf32>
    %43 = tpu.matmul %41, %42, %cst_69 {dimension_numbers = #tpu.dot_dimension_numbers<[1], [0], [0], [1], [0, 0, 1, 1], [], []>} : vector<64x36xf32>, vector<36x8xf32>, vector<64x8xf32> -> vector<64x8xf32>
    %c0_70 = arith.constant 0 : index
    %c0_71 = arith.constant 0 : index
    %44 = vector.load %arg4[%c0_70, %c0_71] : memref<1x8xf32, #tpu.memory_space<vmem>>, vector<1x8xf32>
    %45 = vector.broadcast %44 : vector<1x8xf32> to vector<64x8xf32>
    %46 = arith.addf %43, %45 : vector<64x8xf32>
    %cst_72 = arith.constant 0.000000e+00 : f32
    %47 = vector.broadcast %cst_72 : f32 to vector<64x8xf32>
    %48 = arith.subf %47, %46 : vector<64x8xf32>
    %49 = math.exp %48 : vector<64x8xf32>
    %cst_73 = arith.constant 1.000000e+00 : f32
    %50 = vector.broadcast %cst_73 : f32 to vector<64x8xf32>
    %51 = arith.addf %50, %49 : vector<64x8xf32>
    %cst_74 = arith.constant 1.000000e+00 : f32
    %52 = vector.broadcast %cst_74 : f32 to vector<64x8xf32>
    %53 = arith.divf %52, %51 : vector<64x8xf32>
    %54 = arith.mulf %46, %53 : vector<64x8xf32>
    %c0_75 = arith.constant 0 : index
    %c0_76 = arith.constant 0 : index
    %c0_77 = arith.constant 0 : index
    %55 = vector.load %arg2[%c0_75, %c0_76, %c0_77] : memref<1x1x32xf32, #tpu.memory_space<vmem>>, vector<1x1x32xf32>
    %56 = vector.shape_cast %55 : vector<1x1x32xf32> to vector<1x32xf32>
    %cst_78 = arith.constant 0.000000e+00 : f32
    %57 = vector.broadcast %cst_78 : f32 to vector<1x32xf32>
    %58 = arith.subf %57, %56 : vector<1x32xf32>
    %59 = math.exp %58 : vector<1x32xf32>
    %cst_79 = arith.constant 1.000000e+00 : f32
    %60 = vector.broadcast %cst_79 : f32 to vector<1x32xf32>
    %61 = arith.addf %60, %59 : vector<1x32xf32>
    %cst_80 = arith.constant 1.000000e+00 : f32
    %62 = vector.broadcast %cst_80 : f32 to vector<1x32xf32>
    %63 = arith.divf %62, %61 : vector<1x32xf32>
    %64 = arith.mulf %56, %63 : vector<1x32xf32>
    %c0_81 = arith.constant 0 : index
    %c0_82 = arith.constant 0 : index
    %65 = vector.load %arg5[%c0_81, %c0_82] : memref<32x8xf32, #tpu.memory_space<vmem>>, vector<32x8xf32>
    %cst_83 = arith.constant dense<0.000000e+00> : vector<1x8xf32>
    %66 = tpu.matmul %64, %65, %cst_83 {dimension_numbers = #tpu.dot_dimension_numbers<[1], [0], [0], [1], [0, 0, 1, 1], [], []>} : vector<1x32xf32>, vector<32x8xf32>, vector<1x8xf32> -> vector<1x8xf32>
    %c0_84 = arith.constant 0 : index
    %c0_85 = arith.constant 0 : index
    %67 = vector.load %arg6[%c0_84, %c0_85] : memref<1x8xf32, #tpu.memory_space<vmem>>, vector<1x8xf32>
    %68 = arith.addf %66, %67 : vector<1x8xf32>
    %69 = vector.broadcast %68 : vector<1x8xf32> to vector<64x8xf32>
    %70 = arith.addf %54, %69 : vector<64x8xf32>
    %cst_86 = arith.constant 0.000000e+00 : f32
    %71 = vector.broadcast %cst_86 : f32 to vector<1x10x8xf32>
    %c0_87 = arith.constant 0 : index
    %c0_88 = arith.constant 0 : index
    %c0_89 = arith.constant 0 : index
    %72 = vector.load %arg13[%c0_87, %c0_88, %c0_89] : memref<10x10x8xf32, #tpu.memory_space<vmem>>, vector<1x10x8xf32>
    tpu.vector_store %arg13[%c0_87, %c0_88, %c0_89], %71 {strides = array<i32>} : memref<10x10x8xf32, #tpu.memory_space<vmem>>, vector<1x10x8xf32>,
    %cst_90 = arith.constant 0.000000e+00 : f32
    %73 = vector.broadcast %cst_90 : f32 to vector<1x10x8xf32>
    %c9_91 = arith.constant 9 : index
    %c0_92 = arith.constant 0 : index
    %c0_93 = arith.constant 0 : index
    %74 = vector.load %arg13[%c9_91, %c0_92, %c0_93] : memref<10x10x8xf32, #tpu.memory_space<vmem>>, vector<1x10x8xf32>
    tpu.vector_store %arg13[%c9_91, %c0_92, %c0_93], %73 {strides = array<i32>} : memref<10x10x8xf32, #tpu.memory_space<vmem>>, vector<1x10x8xf32>,
    %cst_94 = arith.constant 0.000000e+00 : f32
    %75 = vector.broadcast %cst_94 : f32 to vector<10x1x8xf32>
    %c0_95 = arith.constant 0 : index
    %c0_96 = arith.constant 0 : index
    %c0_97 = arith.constant 0 : index
    %76 = vector.load %arg13[%c0_95, %c0_96, %c0_97] : memref<10x10x8xf32, #tpu.memory_space<vmem>>, vector<10x1x8xf32>
    tpu.vector_store %arg13[%c0_95, %c0_96, %c0_97], %75 {strides = array<i32>} : memref<10x10x8xf32, #tpu.memory_space<vmem>>, vector<10x1x8xf32>,
    %cst_98 = arith.constant 0.000000e+00 : f32
    %77 = vector.broadcast %cst_98 : f32 to vector<10x1x8xf32>
    %c0_99 = arith.constant 0 : index
    %c9_100 = arith.constant 9 : index
    %c0_101 = arith.constant 0 : index
    %78 = vector.load %arg13[%c0_99, %c9_100, %c0_101] : memref<10x10x8xf32, #tpu.memory_space<vmem>>, vector<10x1x8xf32>
    tpu.vector_store %arg13[%c0_99, %c9_100, %c0_101], %77 {strides = array<i32>} : memref<10x10x8xf32, #tpu.memory_space<vmem>>, vector<10x1x8xf32>,
    %79 = vector.shape_cast %70 : vector<64x8xf32> to vector<8x8x8xf32>
    %c1_102 = arith.constant 1 : index
    %c1_103 = arith.constant 1 : index
    %c0_104 = arith.constant 0 : index
    %80 = vector.load %arg13[%c1_102, %c1_103, %c0_104] : memref<10x10x8xf32, #tpu.memory_space<vmem>>, vector<8x8x8xf32>
    tpu.vector_store %arg13[%c1_102, %c1_103, %c0_104], %79 {strides = array<i32>} : memref<10x10x8xf32, #tpu.memory_space<vmem>>, vector<8x8x8xf32>,
    %c0_105 = arith.constant 0 : index
    %c0_106 = arith.constant 0 : index
    %c0_107 = arith.constant 0 : index
    %81 = vector.load %arg13[%c0_105, %c0_106, %c0_107] : memref<10x10x8xf32, #tpu.memory_space<vmem>>, vector<8x8x8xf32>
    %c0_108 = arith.constant 0 : index
    %c0_109 = arith.constant 0 : index
    %c0_110 = arith.constant 0 : index
    %82 = vector.load %arg15[%c0_108, %c0_109, %c0_110] : memref<8x8x72xf32, #tpu.memory_space<vmem>>, vector<8x8x8xf32>
    tpu.vector_store %arg15[%c0_108, %c0_109, %c0_110], %81 {strides = array<i32>} : memref<8x8x72xf32, #tpu.memory_space<vmem>>, vector<8x8x8xf32>,
    %c0_111 = arith.constant 0 : index
    %c1_112 = arith.constant 1 : index
    %c0_113 = arith.constant 0 : index
    %83 = vector.load %arg13[%c0_111, %c1_112, %c0_113] : memref<10x10x8xf32, #tpu.memory_space<vmem>>, vector<8x8x8xf32>
    %c0_114 = arith.constant 0 : index
    %c0_115 = arith.constant 0 : index
    %c8_116 = arith.constant 8 : index
    %84 = vector.load %arg15[%c0_114, %c0_115, %c8_116] : memref<8x8x72xf32, #tpu.memory_space<vmem>>, vector<8x8x8xf32>
    tpu.vector_store %arg15[%c0_114, %c0_115, %c8_116], %83 {strides = array<i32>} : memref<8x8x72xf32, #tpu.memory_space<vmem>>, vector<8x8x8xf32>,
    %c0_117 = arith.constant 0 : index
    %c2_118 = arith.constant 2 : index
    %c0_119 = arith.constant 0 : index
    %85 = vector.load %arg13[%c0_117, %c2_118, %c0_119] : memref<10x10x8xf32, #tpu.memory_space<vmem>>, vector<8x8x8xf32>
    %c0_120 = arith.constant 0 : index
    %c0_121 = arith.constant 0 : index
    %c16_122 = arith.constant 16 : index
    %86 = vector.load %arg15[%c0_120, %c0_121, %c16_122] : memref<8x8x72xf32, #tpu.memory_space<vmem>>, vector<8x8x8xf32>
    tpu.vector_store %arg15[%c0_120, %c0_121, %c16_122], %85 {strides = array<i32>} : memref<8x8x72xf32, #tpu.memory_space<vmem>>, vector<8x8x8xf32>,
    %c1_123 = arith.constant 1 : index
    %c0_124 = arith.constant 0 : index
    %c0_125 = arith.constant 0 : index
    %87 = vector.load %arg13[%c1_123, %c0_124, %c0_125] : memref<10x10x8xf32, #tpu.memory_space<vmem>>, vector<8x8x8xf32>
    %c0_126 = arith.constant 0 : index
    %c0_127 = arith.constant 0 : index
    %c24_128 = arith.constant 24 : index
    %88 = vector.load %arg15[%c0_126, %c0_127, %c24_128] : memref<8x8x72xf32, #tpu.memory_space<vmem>>, vector<8x8x8xf32>
    tpu.vector_store %arg15[%c0_126, %c0_127, %c24_128], %87 {strides = array<i32>} : memref<8x8x72xf32, #tpu.memory_space<vmem>>, vector<8x8x8xf32>,
    %c1_129 = arith.constant 1 : index
    %c1_130 = arith.constant 1 : index
    %c0_131 = arith.constant 0 : index
    %89 = vector.load %arg13[%c1_129, %c1_130, %c0_131] : memref<10x10x8xf32, #tpu.memory_space<vmem>>, vector<8x8x8xf32>
    %c0_132 = arith.constant 0 : index
    %c0_133 = arith.constant 0 : index
    %c32_134 = arith.constant 32 : index
    %90 = vector.load %arg15[%c0_132, %c0_133, %c32_134] : memref<8x8x72xf32, #tpu.memory_space<vmem>>, vector<8x8x8xf32>
    tpu.vector_store %arg15[%c0_132, %c0_133, %c32_134], %89 {strides = array<i32>} : memref<8x8x72xf32, #tpu.memory_space<vmem>>, vector<8x8x8xf32>,
    %c1_135 = arith.constant 1 : index
    %c2_136 = arith.constant 2 : index
    %c0_137 = arith.constant 0 : index
    %91 = vector.load %arg13[%c1_135, %c2_136, %c0_137] : memref<10x10x8xf32, #tpu.memory_space<vmem>>, vector<8x8x8xf32>
    %c0_138 = arith.constant 0 : index
    %c0_139 = arith.constant 0 : index
    %c40 = arith.constant 40 : index
    %92 = vector.load %arg15[%c0_138, %c0_139, %c40] : memref<8x8x72xf32, #tpu.memory_space<vmem>>, vector<8x8x8xf32>
    tpu.vector_store %arg15[%c0_138, %c0_139, %c40], %91 {strides = array<i32>} : memref<8x8x72xf32, #tpu.memory_space<vmem>>, vector<8x8x8xf32>,
    %c2_140 = arith.constant 2 : index
    %c0_141 = arith.constant 0 : index
    %c0_142 = arith.constant 0 : index
    %93 = vector.load %arg13[%c2_140, %c0_141, %c0_142] : memref<10x10x8xf32, #tpu.memory_space<vmem>>, vector<8x8x8xf32>
    %c0_143 = arith.constant 0 : index
    %c0_144 = arith.constant 0 : index
    %c48 = arith.constant 48 : index
    %94 = vector.load %arg15[%c0_143, %c0_144, %c48] : memref<8x8x72xf32, #tpu.memory_space<vmem>>, vector<8x8x8xf32>
    tpu.vector_store %arg15[%c0_143, %c0_144, %c48], %93 {strides = array<i32>} : memref<8x8x72xf32, #tpu.memory_space<vmem>>, vector<8x8x8xf32>,
    %c2_145 = arith.constant 2 : index
    %c1_146 = arith.constant 1 : index
    %c0_147 = arith.constant 0 : index
    %95 = vector.load %arg13[%c2_145, %c1_146, %c0_147] : memref<10x10x8xf32, #tpu.memory_space<vmem>>, vector<8x8x8xf32>
    %c0_148 = arith.constant 0 : index
    %c0_149 = arith.constant 0 : index
    %c56 = arith.constant 56 : index
    %96 = vector.load %arg15[%c0_148, %c0_149, %c56] : memref<8x8x72xf32, #tpu.memory_space<vmem>>, vector<8x8x8xf32>
    tpu.vector_store %arg15[%c0_148, %c0_149, %c56], %95 {strides = array<i32>} : memref<8x8x72xf32, #tpu.memory_space<vmem>>, vector<8x8x8xf32>,
    %c2_150 = arith.constant 2 : index
    %c2_151 = arith.constant 2 : index
    %c0_152 = arith.constant 0 : index
    %97 = vector.load %arg13[%c2_150, %c2_151, %c0_152] : memref<10x10x8xf32, #tpu.memory_space<vmem>>, vector<8x8x8xf32>
    %c0_153 = arith.constant 0 : index
    %c0_154 = arith.constant 0 : index
    %c64 = arith.constant 64 : index
    %98 = vector.load %arg15[%c0_153, %c0_154, %c64] : memref<8x8x72xf32, #tpu.memory_space<vmem>>, vector<8x8x8xf32>
    tpu.vector_store %arg15[%c0_153, %c0_154, %c64], %97 {strides = array<i32>} : memref<8x8x72xf32, #tpu.memory_space<vmem>>, vector<8x8x8xf32>,
    %c0_155 = arith.constant 0 : index
    %c0_156 = arith.constant 0 : index
    %c0_157 = arith.constant 0 : index
    %99 = vector.load %arg15[%c0_155, %c0_156, %c0_157] : memref<8x8x72xf32, #tpu.memory_space<vmem>>, vector<8x8x72xf32>
    %100 = vector.shape_cast %99 : vector<8x8x72xf32> to vector<64x72xf32>
    %c0_158 = arith.constant 0 : index
    %c0_159 = arith.constant 0 : index
    %101 = vector.load %arg7[%c0_158, %c0_159] : memref<72x8xf32, #tpu.memory_space<vmem>>, vector<72x8xf32>
    %cst_160 = arith.constant dense<0.000000e+00> : vector<64x8xf32>
    %102 = tpu.matmul %100, %101, %cst_160 {dimension_numbers = #tpu.dot_dimension_numbers<[1], [0], [0], [1], [0, 0, 1, 1], [], []>} : vector<64x72xf32>, vector<72x8xf32>, vector<64x8xf32> -> vector<64x8xf32>
    %c0_161 = arith.constant 0 : index
    %c0_162 = arith.constant 0 : index
    %103 = vector.load %arg8[%c0_161, %c0_162] : memref<1x8xf32, #tpu.memory_space<vmem>>, vector<1x8xf32>
    %104 = vector.broadcast %103 : vector<1x8xf32> to vector<64x8xf32>
    %105 = arith.addf %102, %104 : vector<64x8xf32>
    %cst_163 = arith.constant 0.000000e+00 : f32
    %106 = vector.broadcast %cst_163 : f32 to vector<64x8xf32>
    %107 = arith.subf %106, %105 : vector<64x8xf32>
    %108 = math.exp %107 : vector<64x8xf32>
    %cst_164 = arith.constant 1.000000e+00 : f32
    %109 = vector.broadcast %cst_164 : f32 to vector<64x8xf32>
    %110 = arith.addf %109, %108 : vector<64x8xf32>
    %cst_165 = arith.constant 1.000000e+00 : f32
    %111 = vector.broadcast %cst_165 : f32 to vector<64x8xf32>
    %112 = arith.divf %111, %110 : vector<64x8xf32>
    %113 = arith.mulf %105, %112 : vector<64x8xf32>
    %114 = vector.shape_cast %12 : vector<8x8x4xf32> to vector<64x4xf32>
    %c0_166 = arith.constant 0 : index
    %c0_167 = arith.constant 0 : index
    %115 = vector.load %arg9[%c0_166, %c0_167] : memref<4x8xf32, #tpu.memory_space<vmem>>, vector<4x8xf32>
    %cst_168 = arith.constant dense<0.000000e+00> : vector<64x8xf32>
    %116 = tpu.matmul %114, %115, %cst_168 {dimension_numbers = #tpu.dot_dimension_numbers<[1], [0], [0], [1], [0, 0, 1, 1], [], []>} : vector<64x4xf32>, vector<4x8xf32>, vector<64x8xf32> -> vector<64x8xf32>
    %c0_169 = arith.constant 0 : index
    %c0_170 = arith.constant 0 : index
    %117 = vector.load %arg10[%c0_169, %c0_170] : memref<1x8xf32, #tpu.memory_space<vmem>>, vector<1x8xf32>
    %118 = vector.broadcast %117 : vector<1x8xf32> to vector<64x8xf32>
    %119 = arith.addf %116, %118 : vector<64x8xf32>
    %120 = arith.addf %119, %113 : vector<64x8xf32>
    %121 = tpu.transpose %120, [1, 0] : vector<64x8xf32> -> vector<8x64xf32>
    %c0_171 = arith.constant 0 : index
    %c0_172 = arith.constant 0 : index
    %c0_173 = arith.constant 0 : index
    %122 = vector.load %arg11[%c0_171, %c0_172, %c0_173] : memref<1x8x64xf32, #tpu.memory_space<vmem>>, vector<1x8x64xf32>
    %123 = vector.shape_cast %122 : vector<1x8x64xf32> to vector<8x64xf32>
    %124 = vector.shape_cast %121 : vector<8x64xf32> to vector<1x8x64xf32>
    tpu.vector_store %arg11[%c0_171, %c0_172, %c0_173], %124 {strides = array<i32>} : memref<1x8x64xf32, #tpu.memory_space<vmem>>, vector<1x8x64xf32>,
    return
  }
  func.func @transform_0(%arg0: i32) -> (i32, i32, i32) {
    %c0_i32 = arith.constant 0 : i32
    %c0_i32_0 = arith.constant 0 : i32
    %c0_i32_1 = arith.constant 0 : i32
    return %arg0, %c0_i32, %c0_i32_0 : i32, i32, i32
  }
  func.func @transform_1(%arg0: i32) -> (i32, i32, i32) {
    %c0_i32 = arith.constant 0 : i32
    %c0_i32_0 = arith.constant 0 : i32
    %c0_i32_1 = arith.constant 0 : i32
    return %arg0, %c0_i32, %c0_i32_0 : i32, i32, i32
  }
  func.func @transform_2(%arg0: i32) -> (i32, i32) {
    %c0_i32 = arith.constant 0 : i32
    %c0_i32_0 = arith.constant 0 : i32
    %c0_i32_1 = arith.constant 0 : i32
    return %c0_i32, %c0_i32_0 : i32, i32
  }
  func.func @transform_3(%arg0: i32) -> (i32, i32) {
    %c0_i32 = arith.constant 0 : i32
    %c0_i32_0 = arith.constant 0 : i32
    %c0_i32_1 = arith.constant 0 : i32
    return %c0_i32, %c0_i32_0 : i32, i32
  }
  func.func @transform_4(%arg0: i32) -> (i32, i32) {
    %c0_i32 = arith.constant 0 : i32
    %c0_i32_0 = arith.constant 0 : i32
    %c0_i32_1 = arith.constant 0 : i32
    return %c0_i32, %c0_i32_0 : i32, i32
  }
  func.func @transform_5(%arg0: i32) -> (i32, i32) {
    %c0_i32 = arith.constant 0 : i32
    %c0_i32_0 = arith.constant 0 : i32
    %c0_i32_1 = arith.constant 0 : i32
    return %c0_i32, %c0_i32_0 : i32, i32
  }
  func.func @transform_6(%arg0: i32) -> (i32, i32) {
    %c0_i32 = arith.constant 0 : i32
    %c0_i32_0 = arith.constant 0 : i32
    %c0_i32_1 = arith.constant 0 : i32
    return %c0_i32, %c0_i32_0 : i32, i32
  }
  func.func @transform_7(%arg0: i32) -> (i32, i32) {
    %c0_i32 = arith.constant 0 : i32
    %c0_i32_0 = arith.constant 0 : i32
    %c0_i32_1 = arith.constant 0 : i32
    return %c0_i32, %c0_i32_0 : i32, i32
  }
  func.func @transform_8(%arg0: i32) -> (i32, i32) {
    %c0_i32 = arith.constant 0 : i32
    %c0_i32_0 = arith.constant 0 : i32
    %c0_i32_1 = arith.constant 0 : i32
    return %c0_i32, %c0_i32_0 : i32, i32
  }
  func.func @transform_9(%arg0: i32) -> (i32, i32) {
    %c0_i32 = arith.constant 0 : i32
    %c0_i32_0 = arith.constant 0 : i32
    %c0_i32_1 = arith.constant 0 : i32
    return %c0_i32, %c0_i32_0 : i32, i32
  }
  func.func @transform_10(%arg0: i32) -> (i32, i32, i32) {
    %c0_i32 = arith.constant 0 : i32
    %c0_i32_0 = arith.constant 0 : i32
    %c0_i32_1 = arith.constant 0 : i32
    return %arg0, %c0_i32, %c0_i32_0 : i32, i32, i32
  }
}

</mosaic_0001>

<llo_original>
// kernel: tpu_custom_call.1
$region0: #{tpu_custom_call.1}
  #allocation0 [shape = 'u32[]', space=smem, size = 0x4, offset = 0x4, fixed_abs, tag = 'smem constant byte address 0x4 - core index']
  #allocation1 [shape = 'u32[72,128]{1,0:T(1,128)}', space=vmem, size = 0x9000, scoped, tag = 'internal scratch']
  #allocation2 [shape = 'f32[10,10,4]{2,1,0:T(8,128)}', space=vmem, size = 0x14000, scoped, tag = 'scratch operand']
  #allocation3 [shape = 'f32[10,10,8]{2,1,0:T(8,128)}', space=vmem, size = 0x14000, scoped, tag = 'scratch operand']
  #allocation4 [shape = 'f32[8,8,36]{2,1,0:T(8,128)}', space=vmem, size = 0x8000, scoped, tag = 'scratch operand']
  #allocation5 [shape = 'f32[8,8,72]{2,1,0:T(8,128)}', space=vmem, size = 0x8000, scoped, tag = 'scratch operand']
  %s0 = inlined_call_operand.vmem [shape: f32[2,128,8], index: 0, kind: input, shape index: {}]
  %s1 = inlined_call_operand.vmem [shape: f32[2,1,32], index: 1, kind: input, shape index: {}]
  %s2 = inlined_call_operand.vmem [shape: f32[36,8], index: 2, kind: input, shape index: {}]
  %s3 = inlined_call_operand.vmem [shape: f32[1,8], index: 3, kind: input, shape index: {}]
  %s4 = inlined_call_operand.vmem [shape: f32[32,8], index: 4, kind: input, shape index: {}]
  %s5 = inlined_call_operand.vmem [shape: f32[1,8], index: 5, kind: input, shape index: {}]
  %s6 = inlined_call_operand.vmem [shape: f32[72,8], index: 6, kind: input, shape index: {}]
  %s7 = inlined_call_operand.vmem [shape: f32[1,8], index: 7, kind: input, shape index: {}]
  %s8 = inlined_call_operand.vmem [shape: f32[4,8], index: 8, kind: input, shape index: {}]
  %s9 = inlined_call_operand.vmem [shape: f32[1,8], index: 9, kind: input, shape index: {}]
  %s10 = inlined_call_operand.hbm [shape: f32[2,8,64], index: 10, kind: output, shape index: {}]
  %s11 = sld [smem:[#allocation0]]
  $region73: #{tpu_custom_call.1} parent=0
    _
  %s13 = ssub.s32 1, %s11
  %s14 = scalar_select 0, %s13, %s11
  $region1: #{tpu_custom_call.1} parent=0
    #allocation6 [shape = 'u8[8192]{0}', space=vmem, size = 0x2000, scoped, tag = 'output window, operand 0']
    #allocation7 [shape = 's32[2]{0}', space=sflag, size = 0x8, scoped, tag = 'scoped memory for tpu_custom_call.1']
    %15 = vsyncpa [#allocation7], 0
    %s16 = scalar_lea.sflag [#allocation7], 1
    %17 = vsyncpa %s16, 0
    loop: start=0, step=1, limit=4
    $region2: #{tpu_custom_call.1} parent=1 // loop_pre_header
      _
    $region3: #{tpu_custom_call.1} parent=1 // loop_header
      %s19 = sphi 0, %s23
      %p20 = scmp.ge.s32.totalorder %s19, 4
      %s29 = sphi 0, %s31
      %s32 = sphi 0, %s29
      %s33 = sphi 0, %s32
      %s49 = sphi 0, %s33
      %s55 = sphi 0, %s57
      %s58 = sphi 0, %s55
      %s59 = sphi 0, %s58
      %s75 = sphi 0, %s59
      %s79 = sphi 0, %s79
      %s81 = sphi 0, %s79
      %s82 = sphi 0, %s81
      %s96 = sphi 0, %s82
      %s100 = sphi 0, %s100
      %s102 = sphi 0, %s100
      %s103 = sphi 0, %s102
      %s117 = sphi 0, %s103
      %s121 = sphi 0, %s121
      %s123 = sphi 0, %s121
      %s124 = sphi 0, %s123
      %s138 = sphi 0, %s124
      %s142 = sphi 0, %s142
      %s144 = sphi 0, %s142
      %s145 = sphi 0, %s144
      %s159 = sphi 0, %s145
      %s163 = sphi 0, %s163
      %s165 = sphi 0, %s163
      %s166 = sphi 0, %s165
      %s180 = sphi 0, %s166
      %s184 = sphi 0, %s184
      %s186 = sphi 0, %s184
      %s187 = sphi 0, %s186
      %s201 = sphi 0, %s187
      %s205 = sphi 0, %s205
      %s207 = sphi 0, %s205
      %s208 = sphi 0, %s207
      %s222 = sphi 0, %s208
      %s226 = sphi 0, %s226
      %s228 = sphi 0, %s226
      %s229 = sphi 0, %s228
      %s243 = sphi 0, %s229
      %s249 = sphi 0, %s251
      %s252 = sphi 0, %s249
      %s253 = sphi 0, %s252
      %s269 = sphi 0, %s253
    $region4: #{tpu_custom_call.1} parent=1 // loop_header_branch
      %22 = sbr.rel (%p20) target = $region8
    $region5: #{tpu_custom_call.1} parent=1 // loop_body
      %s24 = ssub.s32 %s19, 1
      %s25 = ssub.s32 %s19, 2
      %s26 = sadd.s32 %s19, 1
      %s27 = ssub.s32 %s19, %s26
      %p28 = scmp.eq.s32.totalorder %s27, 0
      %s30 = sadd.s32 %s29, 1
      %s31 = scalar_select %p28, %s29, %s30
      %p34 = pneg %p28
      %p35 = scmp.eq.s32.totalorder %s19, 1
      %p36 = por %p34, %p35
      %p37 = scmp.ne.s32.totalorder %s29, %s32
      %p38 = scmp.eq.s32.totalorder %s19, 0
      %p39 = por %p37, %p38
      %p40 = scmp.ne.s32.totalorder %s29, %s32
      %p41 = scmp.eq.s32.totalorder %s24, 1
      %p42 = por %p40, %p41
      %p43 = scmp.ne.s32.totalorder %s32, %s33
      %p44 = scmp.eq.s32.totalorder %s24, 0
      %p45 = por %p43, %p44
      %p46 = scmp.ne.s32.totalorder %s32, %s33
      %p47 = scmp.eq.s32.totalorder %s25, 1
      %p48 = por %p46, %p47
      %p50 = scmp.ne.s32.totalorder %s33, %s49
      %p51 = scmp.eq.s32.totalorder %s25, 0
      %p52 = por %p50, %p51
      %s53 = ssub.s32 %s19, %s26
      %p54 = scmp.eq.s32.totalorder %s53, 0
      %s56 = sadd.s32 %s55, 1
      %s57 = scalar_select %p54, %s55, %s56
      %p60 = pneg %p54
      %p61 = scmp.eq.s32.totalorder %s19, 1
      %p62 = por %p60, %p61
      %p63 = scmp.ne.s32.totalorder %s55, %s58
      %p64 = scmp.eq.s32.totalorder %s19, 0
      %p65 = por %p63, %p64
      %p66 = scmp.ne.s32.totalorder %s55, %s58
      %p67 = scmp.eq.s32.totalorder %s24, 1
      %p68 = por %p66, %p67
      %p69 = scmp.ne.s32.totalorder %s58, %s59
      %p70 = scmp.eq.s32.totalorder %s24, 0
      %p71 = por %p69, %p70
      %p72 = scmp.ne.s32.totalorder %s58, %s59
      %p73 = scmp.eq.s32.totalorder %s25, 1
      %p74 = por %p72, %p73
      %p76 = scmp.ne.s32.totalorder %s59, %s75
      %p77 = scmp.eq.s32.totalorder %s25, 0
      %p78 = por %p76, %p77
      %s80 = sadd.s32 %s79, 1
      %p83 = scmp.eq.s32.totalorder %s19, 1
      %p84 = scmp.ne.s32.totalorder %s79, %s81
      %p85 = scmp.eq.s32.totalorder %s19, 0
      %p86 = por %p84, %p85
      %p87 = scmp.ne.s32.totalorder %s79, %s81
      %p88 = scmp.eq.s32.totalorder %s24, 1
      %p89 = por %p87, %p88
      %p90 = scmp.ne.s32.totalorder %s81, %s82
      %p91 = scmp.eq.s32.totalorder %s24, 0
      %p92 = por %p90, %p91
      %p93 = scmp.ne.s32.totalorder %s81, %s82
      %p94 = scmp.eq.s32.totalorder %s25, 1
      %p95 = por %p93, %p94
      %p97 = scmp.ne.s32.totalorder %s82, %s96
      %p98 = scmp.eq.s32.totalorder %s25, 0
      %p99 = por %p97, %p98
      %s101 = sadd.s32 %s100, 1
      %p104 = scmp.eq.s32.totalorder %s19, 1
      %p105 = scmp.ne.s32.totalorder %s100, %s102
      %p106 = scmp.eq.s32.totalorder %s19, 0
      %p107 = por %p105, %p106
      %p108 = scmp.ne.s32.totalorder %s100, %s102
      %p109 = scmp.eq.s32.totalorder %s24, 1
      %p110 = por %p108, %p109
      %p111 = scmp.ne.s32.totalorder %s102, %s103
      %p112 = scmp.eq.s32.totalorder %s24, 0
      %p113 = por %p111, %p112
      %p114 = scmp.ne.s32.totalorder %s102, %s103
      %p115 = scmp.eq.s32.totalorder %s25, 1
      %p116 = por %p114, %p115
      %p118 = scmp.ne.s32.totalorder %s103, %s117
      %p119 = scmp.eq.s32.totalorder %s25, 0
      %p120 = por %p118, %p119
      %s122 = sadd.s32 %s121, 1
      %p125 = scmp.eq.s32.totalorder %s19, 1
      %p126 = scmp.ne.s32.totalorder %s121, %s123
      %p127 = scmp.eq.s32.totalorder %s19, 0
      %p128 = por %p126, %p127
      %p129 = scmp.ne.s32.totalorder %s121, %s123
      %p130 = scmp.eq.s32.totalorder %s24, 1
      %p131 = por %p129, %p130
      %p132 = scmp.ne.s32.totalorder %s123, %s124
      %p133 = scmp.eq.s32.totalorder %s24, 0
      %p134 = por %p132, %p133
      %p135 = scmp.ne.s32.totalorder %s123, %s124
      %p136 = scmp.eq.s32.totalorder %s25, 1
      %p137 = por %p135, %p136
      %p139 = scmp.ne.s32.totalorder %s124, %s138
      %p140 = scmp.eq.s32.totalorder %s25, 0
      %p141 = por %p139, %p140
      %s143 = sadd.s32 %s142, 1
      %p146 = scmp.eq.s32.totalorder %s19, 1
      %p147 = scmp.ne.s32.totalorder %s142, %s144
      %p148 = scmp.eq.s32.totalorder %s19, 0
      %p149 = por %p147, %p148
      %p150 = scmp.ne.s32.totalorder %s142, %s144
      %p151 = scmp.eq.s32.totalorder %s24, 1
      %p152 = por %p150, %p151
      %p153 = scmp.ne.s32.totalorder %s144, %s145
      %p154 = scmp.eq.s32.totalorder %s24, 0
      %p155 = por %p153, %p154
      %p156 = scmp.ne.s32.totalorder %s144, %s145
      %p157 = scmp.eq.s32.totalorder %s25, 1
      %p158 = por %p156, %p157
      %p160 = scmp.ne.s32.totalorder %s145, %s159
      %p161 = scmp.eq.s32.totalorder %s25, 0
      %p162 = por %p160, %p161
      %s164 = sadd.s32 %s163, 1
      %p167 = scmp.eq.s32.totalorder %s19, 1
      %p168 = scmp.ne.s32.totalorder %s163, %s165
      %p169 = scmp.eq.s32.totalorder %s19, 0
      %p170 = por %p168, %p169
      %p171 = scmp.ne.s32.totalorder %s163, %s165
      %p172 = scmp.eq.s32.totalorder %s24, 1
      %p173 = por %p171, %p172
      %p174 = scmp.ne.s32.totalorder %s165, %s166
      %p175 = scmp.eq.s32.totalorder %s24, 0
      %p176 = por %p174, %p175
      %p177 = scmp.ne.s32.totalorder %s165, %s166
      %p178 = scmp.eq.s32.totalorder %s25, 1
      %p179 = por %p177, %p178
      %p181 = scmp.ne.s32.totalorder %s166, %s180
      %p182 = scmp.eq.s32.totalorder %s25, 0
      %p183 = por %p181, %p182
      %s185 = sadd.s32 %s184, 1
      %p188 = scmp.eq.s32.totalorder %s19, 1
      %p189 = scmp.ne.s32.totalorder %s184, %s186
      %p190 = scmp.eq.s32.totalorder %s19, 0
      %p191 = por %p189, %p190
      %p192 = scmp.ne.s32.totalorder %s184, %s186
      %p193 = scmp.eq.s32.totalorder %s24, 1
      %p194 = por %p192, %p193
      %p195 = scmp.ne.s32.totalorder %s186, %s187
      %p196 = scmp.eq.s32.totalorder %s24, 0
      %p197 = por %p195, %p196
      %p198 = scmp.ne.s32.totalorder %s186, %s187
      %p199 = scmp.eq.s32.totalorder %s25, 1
      %p200 = por %p198, %p199
      %p202 = scmp.ne.s32.totalorder %s187, %s201
      %p203 = scmp.eq.s32.totalorder %s25, 0
      %p204 = por %p202, %p203
      %s206 = sadd.s32 %s205, 1
      %p209 = scmp.eq.s32.totalorder %s19, 1
      %p210 = scmp.ne.s32.totalorder %s205, %s207
      %p211 = scmp.eq.s32.totalorder %s19, 0
      %p212 = por %p210, %p211
      %p213 = scmp.ne.s32.totalorder %s205, %s207
      %p214 = scmp.eq.s32.totalorder %s24, 1
      %p215 = por %p213, %p214
      %p216 = scmp.ne.s32.totalorder %s207, %s208
      %p217 = scmp.eq.s32.totalorder %s24, 0
      %p218 = por %p216, %p217
      %p219 = scmp.ne.s32.totalorder %s207, %s208
      %p220 = scmp.eq.s32.totalorder %s25, 1
      %p221 = por %p219, %p220
      %p223 = scmp.ne.s32.totalorder %s208, %s222
      %p224 = scmp.eq.s32.totalorder %s25, 0
      %p225 = por %p223, %p224
      %s227 = sadd.s32 %s226, 1
      %p230 = scmp.eq.s32.totalorder %s19, 1
      %p231 = scmp.ne.s32.totalorder %s226, %s228
      %p232 = scmp.eq.s32.totalorder %s19, 0
      %p233 = por %p231, %p232
      %p234 = scmp.ne.s32.totalorder %s226, %s228
      %p235 = scmp.eq.s32.totalorder %s24, 1
      %p236 = por %p234, %p235
      %p237 = scmp.ne.s32.totalorder %s228, %s229
      %p238 = scmp.eq.s32.totalorder %s24, 0
      %p239 = por %p237, %p238
      %p240 = scmp.ne.s32.totalorder %s228, %s229
      %p241 = scmp.eq.s32.totalorder %s25, 1
      %p242 = por %p240, %p241
      %p244 = scmp.ne.s32.totalorder %s229, %s243
      %p245 = scmp.eq.s32.totalorder %s25, 0
      %p246 = por %p244, %p245
      %s247 = ssub.s32 %s19, %s26
      %p248 = scmp.eq.s32.totalorder %s247, 0
      %s250 = sadd.s32 %s249, 1
      %s251 = scalar_select %p248, %s249, %s250
      %p254 = pneg %p248
      %p255 = scmp.eq.s32.totalorder %s19, 1
      %p256 = por %p254, %p255
      %p257 = scmp.ne.s32.totalorder %s249, %s252
      %p258 = scmp.eq.s32.totalorder %s19, 0
      %p259 = por %p257, %p258
      %p260 = scmp.ne.s32.totalorder %s249, %s252
      %p261 = scmp.eq.s32.totalorder %s24, 1
      %p262 = por %p260, %p261
      %p263 = scmp.ne.s32.totalorder %s252, %s253
      %p264 = scmp.eq.s32.totalorder %s24, 0
      %p265 = por %p263, %p264
      %p266 = scmp.ne.s32.totalorder %s252, %s253
      %p267 = scmp.eq.s32.totalorder %s25, 1
      %p268 = por %p266, %p267
      %p270 = scmp.ne.s32.totalorder %s253, %s269
      %p271 = scmp.eq.s32.totalorder %s25, 0
      %p272 = por %p270, %p271
      %p273 = scmp.le.s32.totalorder 1, %s19
      %p274 = scmp.lt.s32.totalorder %s19, 3
      %p275 = pnand %p273, %p274
      %p276 = pneg %p275
      // Predicated region
      $region9: #{tpu_custom_call.1} parent=5 // pred_check
        _
      $region10: #{tpu_custom_call.1} parent=5 // pred_check_branch
        %278 = sbr.rel (%p275) target = $region12
      $region11: #{tpu_custom_call.1} parent=5 // pred_region
        %s279 = ssub.s32 %s19, 1
        // Predicated region
        $region13: #{tpu_custom_call.1} parent=11 // pred_check
          %p280 = pneg %p92
        $region14: #{tpu_custom_call.1} parent=11 // pred_check_branch
          %282 = sbr.rel (%p280) target = $region16
        $region15: #{tpu_custom_call.1} parent=11 // pred_region
          _
        $region16: #{tpu_custom_call.1} parent=11 // pred_fallthru
          _
        // Predicated region
        $region17: #{tpu_custom_call.1} parent=11 // pred_check
          %p283 = pneg %p113
        $region18: #{tpu_custom_call.1} parent=11 // pred_check_branch
          %285 = sbr.rel (%p283) target = $region20
        $region19: #{tpu_custom_call.1} parent=11 // pred_region
          _
        $region20: #{tpu_custom_call.1} parent=11 // pred_fallthru
          _
        // Predicated region
        $region21: #{tpu_custom_call.1} parent=11 // pred_check
          %p286 = pneg %p134
        $region22: #{tpu_custom_call.1} parent=11 // pred_check_branch
          %288 = sbr.rel (%p286) target = $region24
        $region23: #{tpu_custom_call.1} parent=11 // pred_region
          _
        $region24: #{tpu_custom_call.1} parent=11 // pred_fallthru
          _
        // Predicated region
        $region25: #{tpu_custom_call.1} parent=11 // pred_check
          %p289 = pneg %p155
        $region26: #{tpu_custom_call.1} parent=11 // pred_check_branch
          %291 = sbr.rel (%p289) target = $region28
        $region27: #{tpu_custom_call.1} parent=11 // pred_region
          _
        $region28: #{tpu_custom_call.1} parent=11 // pred_fallthru
          _
        // Predicated region
        $region29: #{tpu_custom_call.1} parent=11 // pred_check
          %p292 = pneg %p176
        $region30: #{tpu_custom_call.1} parent=11 // pred_check_branch
          %294 = sbr.rel (%p292) target = $region32
        $region31: #{tpu_custom_call.1} parent=11 // pred_region
          _
        $region32: #{tpu_custom_call.1} parent=11 // pred_fallthru
          _
        // Predicated region
        $region33: #{tpu_custom_call.1} parent=11 // pred_check
          %p295 = pneg %p197
        $region34: #{tpu_custom_call.1} parent=11 // pred_check_branch
          %297 = sbr.rel (%p295) target = $region36
        $region35: #{tpu_custom_call.1} parent=11 // pred_region
          _
        $region36: #{tpu_custom_call.1} parent=11 // pred_fallthru
          _
        // Predicated region
        $region37: #{tpu_custom_call.1} parent=11 // pred_check
          %p298 = pneg %p218
        $region38: #{tpu_custom_call.1} parent=11 // pred_check_branch
          %300 = sbr.rel (%p298) target = $region40
        $region39: #{tpu_custom_call.1} parent=11 // pred_region
          _
        $region40: #{tpu_custom_call.1} parent=11 // pred_fallthru
          _
        // Predicated region
        $region41: #{tpu_custom_call.1} parent=11 // pred_check
          %p301 = pneg %p239
        $region42: #{tpu_custom_call.1} parent=11 // pred_check_branch
          %303 = sbr.rel (%p301) target = $region44
        $region43: #{tpu_custom_call.1} parent=11 // pred_region
          _
        $region44: #{tpu_custom_call.1} parent=11 // pred_fallthru
          _
      $region12: #{tpu_custom_call.1} parent=5 // pred_fallthru
        _
      %p304 = scmp.lt.s32.totalorder %s19, 2
      // Predicated region
      $region45: #{tpu_custom_call.1} parent=5 // pred_check
        %p305 = pneg %p304
      $region46: #{tpu_custom_call.1} parent=5 // pred_check_branch
        %307 = sbr.rel (%p305) target = $region48
      $region47: #{tpu_custom_call.1} parent=5 // pred_region
        // Predicated region
        $region49: #{tpu_custom_call.1} parent=47 // pred_check
          %p308 = pneg %p39
        $region50: #{tpu_custom_call.1} parent=47 // pred_check_branch
          %310 = sbr.rel (%p308) target = $region52
        $region51: #{tpu_custom_call.1} parent=47 // pred_region
          %p311 = scmp.lt.s32.totalorder %s19, 1
          %s312 = scalar_select %p311, %s19, 1
          %s313 = smul.addr %s312, 16
          %s314 = smul.addr %s313, 8
          %s315 = scalar_lea.vmem %s0, %s314
        $region52: #{tpu_custom_call.1} parent=47 // pred_fallthru
          _
        // Predicated region
        $region53: #{tpu_custom_call.1} parent=47 // pred_check
          %p316 = pneg %p65
        $region54: #{tpu_custom_call.1} parent=47 // pred_check_branch
          %318 = sbr.rel (%p316) target = $region56
        $region55: #{tpu_custom_call.1} parent=47 // pred_region
          %p319 = scmp.lt.s32.totalorder %s19, 1
          %s320 = scalar_select %p319, %s19, 1
          %s321 = scalar_lea.vmem %s1, %s320
        $region56: #{tpu_custom_call.1} parent=47 // pred_fallthru
          _
      $region48: #{tpu_custom_call.1} parent=5 // pred_fallthru
        _
      %p322 = scmp.le.s32.totalorder 1, %s19
      %p323 = scmp.lt.s32.totalorder %s19, 3
      %p324 = pnand %p322, %p323
      %p325 = pneg %p324
      // Predicated region
      $region57: #{tpu_custom_call.1} parent=5 // pred_check
        _
      $region58: #{tpu_custom_call.1} parent=5 // pred_check_branch
        %327 = sbr.rel (%p324) target = $region60
      $region59: #{tpu_custom_call.1} parent=5 // pred_region
        %s328 = ssub.s32 %s19, 1
        %p329 = scmp.lt.s32.totalorder %s24, 1
        %s330 = scalar_select %p329, %s24, 1
        %s331 = smul.addr %s330, 16
        %s332 = smul.addr %s331, 8
        %s333 = scalar_lea.vmem %s0, %s332
        %p334 = pneg %p45
        %p335 = pneg %p42
        %p336 = scmp.lt.s32.totalorder %s24, 1
        %s337 = scalar_select %p336, %s24, 1
        %s338 = scalar_lea.vmem %s1, %s337
        %p339 = pneg %p71
        %p340 = pneg %p68
        %p341 = pneg %p92
        %p342 = pneg %p89
        %p343 = pneg %p113
        %p344 = pneg %p110
        %p345 = pneg %p134
        %p346 = pneg %p131
        %p347 = pneg %p155
        %p348 = pneg %p152
        %p349 = pneg %p176
        %p350 = pneg %p173
        %p351 = pneg %p197
        %p352 = pneg %p194
        %p353 = pneg %p218
        %p354 = pneg %p215
        %p355 = pneg %p239
        %p356 = pneg %p236
        %p357 = pneg %p265
        %p358 = pneg %p262
        %s359 = sand.u32 %s252, 1
        %s360 = scalar_lea.sflag [#allocation7], %s359
        %s361 = sand.u32 %s252, 1
        %s362 = smul.addr %s361, 8
        %s363 = scalar_lea.vmem [#allocation6], %s362
        %p364 = scmp.lt.s32.totalorder %s24, 1
        %s365 = scalar_select %p364, %s24, 1
        %s366 = smul.addr %s365, 16
        %s367 = smul.addr %s366, 8
        %s368 = scalar_lea.vmem %s0, %s367
        %p369 = scmp.lt.s32.totalorder %s24, 1
        %s370 = scalar_select %p369, %s24, 1
        %s371 = scalar_lea.vmem %s1, %s370
        %v372 = vld [vmem:[%s368] sm:$0xff]
        %v373 = vld [vmem:[%s368 + $0x8] sm:$0xff]
        %v374 = vld [vmem:[%s368 + $0x10] sm:$0xff]
        %v375 = vld [vmem:[%s368 + $0x18] sm:$0xff]
        %v376 = vld [vmem:[%s368 + $0x20] sm:$0xff]
        %v377 = vld [vmem:[%s368 + $0x28] sm:$0xff]
        %v378 = vld [vmem:[%s368 + $0x30] sm:$0xff]
        %v379 = vld [vmem:[%s368 + $0x38] sm:$0xff]
        %v380 = vld [vmem:[%s368 + $0x40] sm:$0xff]
        %v381 = vld [vmem:[%s368 + $0x48] sm:$0xff]
        %v382 = vld [vmem:[%s368 + $0x50] sm:$0xff]
        %v383 = vld [vmem:[%s368 + $0x58] sm:$0xff]
        %v384 = vld [vmem:[%s368 + $0x60] sm:$0xff]
        %v385 = vld [vmem:[%s368 + $0x68] sm:$0xff]
        %v386 = vld [vmem:[%s368 + $0x70] sm:$0xff]
        %v387 = vld [vmem:[%s368 + $0x78] sm:$0xff]
        %404 = vrot.lane.b32.xlu0 %v372, 124
        %v405 = vpop.permute.xlu0 %404
        %406 = vrot.lane.b32.xlu0 %v373, 124
        %v407 = vpop.permute.xlu0 %406
        %408 = vrot.lane.b32.xlu0 %v374, 124
        %v409 = vpop.permute.xlu0 %408
        %410 = vrot.lane.b32.xlu0 %v375, 124
        %v411 = vpop.permute.xlu0 %410
        %412 = vrot.lane.b32.xlu0 %v376, 124
        %v413 = vpop.permute.xlu0 %412
        %414 = vrot.lane.b32.xlu0 %v377, 124
        %v415 = vpop.permute.xlu0 %414
        %416 = vrot.lane.b32.xlu0 %v378, 124
        %v417 = vpop.permute.xlu0 %416
        %418 = vrot.lane.b32.xlu0 %v379, 124
        %v419 = vpop.permute.xlu0 %418
        %420 = vrot.lane.b32.xlu0 %v380, 124
        %v421 = vpop.permute.xlu0 %420
        %422 = vrot.lane.b32.xlu0 %v381, 124
        %v423 = vpop.permute.xlu0 %422
        %424 = vrot.lane.b32.xlu0 %v382, 124
        %v425 = vpop.permute.xlu0 %424
        %426 = vrot.lane.b32.xlu0 %v383, 124
        %v427 = vpop.permute.xlu0 %426
        %428 = vrot.lane.b32.xlu0 %v384, 124
        %v429 = vpop.permute.xlu0 %428
        %430 = vrot.lane.b32.xlu0 %v385, 124
        %v431 = vpop.permute.xlu0 %430
        %432 = vrot.lane.b32.xlu0 %v386, 124
        %v433 = vpop.permute.xlu0 %432
        %434 = vrot.lane.b32.xlu0 %v387, 124
        %v435 = vpop.permute.xlu0 %434
        %v452 = vadd.f32 %v372, %v405
        %v453 = vadd.f32 %v373, %v407
        %v454 = vadd.f32 %v374, %v409
        %v455 = vadd.f32 %v375, %v411
        %v456 = vadd.f32 %v376, %v413
        %v457 = vadd.f32 %v377, %v415
        %v458 = vadd.f32 %v378, %v417
        %v459 = vadd.f32 %v379, %v419
        %v460 = vadd.f32 %v380, %v421
        %v461 = vadd.f32 %v381, %v423
        %v462 = vadd.f32 %v382, %v425
        %v463 = vadd.f32 %v383, %v427
        %v464 = vadd.f32 %v384, %v429
        %v465 = vadd.f32 %v385, %v431
        %v466 = vadd.f32 %v386, %v433
        %v467 = vadd.f32 %v387, %v435
        %v468 = vadd.f32 %v452, %v453
        %v469 = vadd.f32 %v454, %v455
        %v470 = vadd.f32 %v456, %v457
        %v471 = vadd.f32 %v458, %v459
        %v472 = vadd.f32 %v460, %v461
        %v473 = vadd.f32 %v462, %v463
        %v474 = vadd.f32 %v464, %v465
        %v475 = vadd.f32 %v466, %v467
        %v476 = vmul.f32 %v468, 0.25
        %v477 = vmul.f32 %v469, 0.25
        %v478 = vmul.f32 %v470, 0.25
        %v479 = vmul.f32 %v471, 0.25
        %v480 = vmul.f32 %v472, 0.25
        %v481 = vmul.f32 %v473, 0.25
        %v482 = vmul.f32 %v474, 0.25
        %v483 = vmul.f32 %v475, 0.25
        %vm484 = vcmask 31744
        %485 = vst.msk [vmem:[#allocation2] sm:$0xff] %vm484, 0.0
        %vm486 = vcmask 25600
        %487 = vst.msk [vmem:[#allocation2 + $0x8] sm:$0x3] %vm486, 0.0
        %s488 = scalar_lea.vmem [#allocation2], 144
        %489 = vst.msk [vmem:[%s488] sm:$0xff] %vm484, 0.0
        %490 = vst.msk [vmem:[%s488 + $0x8] sm:$0x3] %vm486, 0.0
        %vm491 = vcmask 24576
        %492 = vst.msk [vmem:[#allocation2] sm:$0x1] %vm491, 0.0
        %493 = vst.msk [vmem:[#allocation2 + $0x10] sm:$0x1] %vm491, 0.0
        %494 = vst.msk [vmem:[#allocation2 + $0x20] sm:$0x1] %vm491, 0.0
        %495 = vst.msk [vmem:[#allocation2 + $0x30] sm:$0x1] %vm491, 0.0
        %496 = vst.msk [vmem:[#allocation2 + $0x40] sm:$0x1] %vm491, 0.0
        %497 = vst.msk [vmem:[#allocation2 + $0x50] sm:$0x1] %vm491, 0.0
        %498 = vst.msk [vmem:[#allocation2 + $0x60] sm:$0x1] %vm491, 0.0
        %499 = vst.msk [vmem:[#allocation2 + $0x70] sm:$0x1] %vm491, 0.0
        %500 = vst.msk [vmem:[#allocation2 + $0x80] sm:$0x1] %vm491, 0.0
        %501 = vst.msk [vmem:[#allocation2 + $0x90] sm:$0x1] %vm491, 0.0
        %502 = vst.msk [vmem:[#allocation2 + $0x9] sm:$0x1] %vm491, 0.0
        %503 = vst.msk [vmem:[#allocation2 + $0x19] sm:$0x1] %vm491, 0.0
        %504 = vst.msk [vmem:[#allocation2 + $0x29] sm:$0x1] %vm491, 0.0
        %505 = vst.msk [vmem:[#allocation2 + $0x39] sm:$0x1] %vm491, 0.0
        %506 = vst.msk [vmem:[#allocation2 + $0x49] sm:$0x1] %vm491, 0.0
        %507 = vst.msk [vmem:[#allocation2 + $0x59] sm:$0x1] %vm491, 0.0
        %508 = vst.msk [vmem:[#allocation2 + $0x69] sm:$0x1] %vm491, 0.0
        %509 = vst.msk [vmem:[#allocation2 + $0x79] sm:$0x1] %vm491, 0.0
        %510 = vst.msk [vmem:[#allocation2 + $0x89] sm:$0x1] %vm491, 0.0
        %511 = vst.msk [vmem:[#allocation2 + $0x99] sm:$0x1] %vm491, 0.0
        %s512 = scalar_lea.vmem [#allocation2], 16
        %513 = vst.msk [vmem:[%s512 + $0x1] sm:$0xff] %vm484, %v476
        %514 = vst.msk [vmem:[%s512 + $0x11] sm:$0xff] %vm484, %v477
        %515 = vst.msk [vmem:[%s512 + $0x21] sm:$0xff] %vm484, %v478
        %516 = vst.msk [vmem:[%s512 + $0x31] sm:$0xff] %vm484, %v479
        %517 = vst.msk [vmem:[%s512 + $0x41] sm:$0xff] %vm484, %v480
        %518 = vst.msk [vmem:[%s512 + $0x51] sm:$0xff] %vm484, %v481
        %519 = vst.msk [vmem:[%s512 + $0x61] sm:$0xff] %vm484, %v482
        %520 = vst.msk [vmem:[%s512 + $0x71] sm:$0xff] %vm484, %v483
        %v521 = vld [vmem:[#allocation2] sm:$0xff]
        %v522 = vld [vmem:[#allocation2 + $0x10] sm:$0xff]
        %v523 = vld [vmem:[#allocation2 + $0x20] sm:$0xff]
        %v524 = vld [vmem:[#allocation2 + $0x30] sm:$0xff]
        %v525 = vld [vmem:[#allocation2 + $0x40] sm:$0xff]
        %v526 = vld [vmem:[#allocation2 + $0x50] sm:$0xff]
        %v527 = vld [vmem:[#allocation2 + $0x60] sm:$0xff]
        %v528 = vld [vmem:[#allocation2 + $0x70] sm:$0xff]
        %529 = vst.msk [vmem:[#allocation4] sm:$0xff] %vm484, %v521
        %530 = vst.msk [vmem:[#allocation4 + $0x8] sm:$0xff] %vm484, %v522
        %531 = vst.msk [vmem:[#allocation4 + $0x10] sm:$0xff] %vm484, %v523
        %532 = vst.msk [vmem:[#allocation4 + $0x18] sm:$0xff] %vm484, %v524
        %533 = vst.msk [vmem:[#allocation4 + $0x20] sm:$0xff] %vm484, %v525
        %534 = vst.msk [vmem:[#allocation4 + $0x28] sm:$0xff] %vm484, %v526
        %535 = vst.msk [vmem:[#allocation4 + $0x30] sm:$0xff] %vm484, %v527
        %536 = vst.msk [vmem:[#allocation4 + $0x38] sm:$0xff] %vm484, %v528
        %v537 = vld [vmem:[#allocation2 + $0x1] sm:$0xff]
        %v538 = vld [vmem:[#allocation2 + $0x11] sm:$0xff]
        %v539 = vld [vmem:[#allocation2 + $0x21] sm:$0xff]
        %v540 = vld [vmem:[#allocation2 + $0x31] sm:$0xff]
        %v541 = vld [vmem:[#allocation2 + $0x41] sm:$0xff]
        %v542 = vld [vmem:[#allocation2 + $0x51] sm:$0xff]
        %v543 = vld [vmem:[#allocation2 + $0x61] sm:$0xff]
        %v544 = vld [vmem:[#allocation2 + $0x71] sm:$0xff]
        %553 = vrot.lane.b32.xlu0 %v537, 4
        %v554 = vpop.permute.xlu0 %553
        %555 = vrot.lane.b32.xlu0 %v538, 4
        %v556 = vpop.permute.xlu0 %555
        %557 = vrot.lane.b32.xlu0 %v539, 4
        %v558 = vpop.permute.xlu0 %557
        %559 = vrot.lane.b32.xlu0 %v540, 4
        %v560 = vpop.permute.xlu0 %559
        %561 = vrot.lane.b32.xlu0 %v541, 4
        %v562 = vpop.permute.xlu0 %561
        %563 = vrot.lane.b32.xlu0 %v542, 4
        %v564 = vpop.permute.xlu0 %563
        %565 = vrot.lane.b32.xlu0 %v543, 4
        %v566 = vpop.permute.xlu0 %565
        %567 = vrot.lane.b32.xlu0 %v544, 4
        %v568 = vpop.permute.xlu0 %567
        %vm577 = vcmask 64544
        %578 = vst.msk [vmem:[#allocation4] sm:$0xff] %vm577, %v554
        %579 = vst.msk [vmem:[#allocation4 + $0x8] sm:$0xff] %vm577, %v556
        %580 = vst.msk [vmem:[#allocation4 + $0x10] sm:$0xff] %vm577, %v558
        %581 = vst.msk [vmem:[#allocation4 + $0x18] sm:$0xff] %vm577, %v560
        %582 = vst.msk [vmem:[#allocation4 + $0x20] sm:$0xff] %vm577, %v562
        %583 = vst.msk [vmem:[#allocation4 + $0x28] sm:$0xff] %vm577, %v564
        %584 = vst.msk [vmem:[#allocation4 + $0x30] sm:$0xff] %vm577, %v566
        %585 = vst.msk [vmem:[#allocation4 + $0x38] sm:$0xff] %vm577, %v568
        %v586 = vld [vmem:[#allocation2 + $0x2] sm:$0xff]
        %v587 = vld [vmem:[#allocation2 + $0x12] sm:$0xff]
        %v588 = vld [vmem:[#allocation2 + $0x22] sm:$0xff]
        %v589 = vld [vmem:[#allocation2 + $0x32] sm:$0xff]
        %v590 = vld [vmem:[#allocation2 + $0x42] sm:$0xff]
        %v591 = vld [vmem:[#allocation2 + $0x52] sm:$0xff]
        %v592 = vld [vmem:[#allocation2 + $0x62] sm:$0xff]
        %v593 = vld [vmem:[#allocation2 + $0x72] sm:$0xff]
        %602 = vrot.lane.b32.xlu0 %v586, 8
        %v603 = vpop.permute.xlu0 %602
        %604 = vrot.lane.b32.xlu0 %v587, 8
        %v605 = vpop.permute.xlu0 %604
        %606 = vrot.lane.b32.xlu0 %v588, 8
        %v607 = vpop.permute.xlu0 %606
        %608 = vrot.lane.b32.xlu0 %v589, 8
        %v609 = vpop.permute.xlu0 %608
        %610 = vrot.lane.b32.xlu0 %v590, 8
        %v611 = vpop.permute.xlu0 %610
        %612 = vrot.lane.b32.xlu0 %v591, 8
        %v613 = vpop.permute.xlu0 %612
        %614 = vrot.lane.b32.xlu0 %v592, 8
        %v615 = vpop.permute.xlu0 %614
        %616 = vrot.lane.b32.xlu0 %v593, 8
        %v617 = vpop.permute.xlu0 %616
        %vm626 = vcmask 97344
        %627 = vst.msk [vmem:[#allocation4] sm:$0xff] %vm626, %v603
        %628 = vst.msk [vmem:[#allocation4 + $0x8] sm:$0xff] %vm626, %v605
        %629 = vst.msk [vmem:[#allocation4 + $0x10] sm:$0xff] %vm626, %v607
        %630 = vst.msk [vmem:[#allocation4 + $0x18] sm:$0xff] %vm626, %v609
        %631 = vst.msk [vmem:[#allocation4 + $0x20] sm:$0xff] %vm626, %v611
        %632 = vst.msk [vmem:[#allocation4 + $0x28] sm:$0xff] %vm626, %v613
        %633 = vst.msk [vmem:[#allocation4 + $0x30] sm:$0xff] %vm626, %v615
        %634 = vst.msk [vmem:[#allocation4 + $0x38] sm:$0xff] %vm626, %v617
        %v635 = vld [vmem:[%s512] sm:$0xff]
        %v636 = vld [vmem:[%s512 + $0x10] sm:$0xff]
        %v637 = vld [vmem:[%s512 + $0x20] sm:$0xff]
        %v638 = vld [vmem:[%s512 + $0x30] sm:$0xff]
        %v639 = vld [vmem:[%s512 + $0x40] sm:$0xff]
        %v640 = vld [vmem:[%s512 + $0x50] sm:$0xff]
        %v641 = vld [vmem:[%s512 + $0x60] sm:$0xff]
        %v642 = vld [vmem:[%s512 + $0x70] sm:$0xff]
        %651 = vrot.lane.b32.xlu0 %v635, 12
        %v652 = vpop.permute.xlu0 %651
        %653 = vrot.lane.b32.xlu0 %v636, 12
        %v654 = vpop.permute.xlu0 %653
        %655 = vrot.lane.b32.xlu0 %v637, 12
        %v656 = vpop.permute.xlu0 %655
        %657 = vrot.lane.b32.xlu0 %v638, 12
        %v658 = vpop.permute.xlu0 %657
        %659 = vrot.lane.b32.xlu0 %v639, 12
        %v660 = vpop.permute.xlu0 %659
        %661 = vrot.lane.b32.xlu0 %v640, 12
        %v662 = vpop.permute.xlu0 %661
        %663 = vrot.lane.b32.xlu0 %v641, 12
        %v664 = vpop.permute.xlu0 %663
        %665 = vrot.lane.b32.xlu0 %v642, 12
        %v666 = vpop.permute.xlu0 %665
        %vm675 = vcmask 130144
        %676 = vst.msk [vmem:[#allocation4] sm:$0xff] %vm675, %v652
        %677 = vst.msk [vmem:[#allocation4 + $0x8] sm:$0xff] %vm675, %v654
        %678 = vst.msk [vmem:[#allocation4 + $0x10] sm:$0xff] %vm675, %v656
        %679 = vst.msk [vmem:[#allocation4 + $0x18] sm:$0xff] %vm675, %v658
        %680 = vst.msk [vmem:[#allocation4 + $0x20] sm:$0xff] %vm675, %v660
        %681 = vst.msk [vmem:[#allocation4 + $0x28] sm:$0xff] %vm675, %v662
        %682 = vst.msk [vmem:[#allocation4 + $0x30] sm:$0xff] %vm675, %v664
        %683 = vst.msk [vmem:[#allocation4 + $0x38] sm:$0xff] %vm675, %v666
        %v684 = vld [vmem:[%s512 + $0x1] sm:$0xff]
        %v685 = vld [vmem:[%s512 + $0x11] sm:$0xff]
        %v686 = vld [vmem:[%s512 + $0x21] sm:$0xff]
        %v687 = vld [vmem:[%s512 + $0x31] sm:$0xff]
        %v688 = vld [vmem:[%s512 + $0x41] sm:$0xff]
        %v689 = vld [vmem:[%s512 + $0x51] sm:$0xff]
        %v690 = vld [vmem:[%s512 + $0x61] sm:$0xff]
        %v691 = vld [vmem:[%s512 + $0x71] sm:$0xff]
        %700 = vrot.lane.b32.xlu0 %v684, 16
        %v701 = vpop.permute.xlu0 %700
        %702 = vrot.lane.b32.xlu0 %v685, 16
        %v703 = vpop.permute.xlu0 %702
        %704 = vrot.lane.b32.xlu0 %v686, 16
        %v705 = vpop.permute.xlu0 %704
        %706 = vrot.lane.b32.xlu0 %v687, 16
        %v707 = vpop.permute.xlu0 %706
        %708 = vrot.lane.b32.xlu0 %v688, 16
        %v709 = vpop.permute.xlu0 %708
        %710 = vrot.lane.b32.xlu0 %v689, 16
        %v711 = vpop.permute.xlu0 %710
        %712 = vrot.lane.b32.xlu0 %v690, 16
        %v713 = vpop.permute.xlu0 %712
        %714 = vrot.lane.b32.xlu0 %v691, 16
        %v715 = vpop.permute.xlu0 %714
        %vm724 = vcmask 162944
        %725 = vst.msk [vmem:[#allocation4] sm:$0xff] %vm724, %v701
        %726 = vst.msk [vmem:[#allocation4 + $0x8] sm:$0xff] %vm724, %v703
        %727 = vst.msk [vmem:[#allocation4 + $0x10] sm:$0xff] %vm724, %v705
        %728 = vst.msk [vmem:[#allocation4 + $0x18] sm:$0xff] %vm724, %v707
        %729 = vst.msk [vmem:[#allocation4 + $0x20] sm:$0xff] %vm724, %v709
        %730 = vst.msk [vmem:[#allocation4 + $0x28] sm:$0xff] %vm724, %v711
        %731 = vst.msk [vmem:[#allocation4 + $0x30] sm:$0xff] %vm724, %v713
        %732 = vst.msk [vmem:[#allocation4 + $0x38] sm:$0xff] %vm724, %v715
        %v733 = vld [vmem:[%s512 + $0x2] sm:$0xff]
        %v734 = vld [vmem:[%s512 + $0x12] sm:$0xff]
        %v735 = vld [vmem:[%s512 + $0x22] sm:$0xff]
        %v736 = vld [vmem:[%s512 + $0x32] sm:$0xff]
        %v737 = vld [vmem:[%s512 + $0x42] sm:$0xff]
        %v738 = vld [vmem:[%s512 + $0x52] sm:$0xff]
        %v739 = vld [vmem:[%s512 + $0x62] sm:$0xff]
        %v740 = vld [vmem:[%s512 + $0x72] sm:$0xff]
        %749 = vrot.lane.b32.xlu0 %v733, 20
        %v750 = vpop.permute.xlu0 %749
        %751 = vrot.lane.b32.xlu0 %v734, 20
        %v752 = vpop.permute.xlu0 %751
        %753 = vrot.lane.b32.xlu0 %v735, 20
        %v754 = vpop.permute.xlu0 %753
        %755 = vrot.lane.b32.xlu0 %v736, 20
        %v756 = vpop.permute.xlu0 %755
        %757 = vrot.lane.b32.xlu0 %v737, 20
        %v758 = vpop.permute.xlu0 %757
        %759 = vrot.lane.b32.xlu0 %v738, 20
        %v760 = vpop.permute.xlu0 %759
        %761 = vrot.lane.b32.xlu0 %v739, 20
        %v762 = vpop.permute.xlu0 %761
        %763 = vrot.lane.b32.xlu0 %v740, 20
        %v764 = vpop.permute.xlu0 %763
        %vm773 = vcmask 195744
        %774 = vst.msk [vmem:[#allocation4] sm:$0xff] %vm773, %v750
        %775 = vst.msk [vmem:[#allocation4 + $0x8] sm:$0xff] %vm773, %v752
        %776 = vst.msk [vmem:[#allocation4 + $0x10] sm:$0xff] %vm773, %v754
        %777 = vst.msk [vmem:[#allocation4 + $0x18] sm:$0xff] %vm773, %v756
        %778 = vst.msk [vmem:[#allocation4 + $0x20] sm:$0xff] %vm773, %v758
        %779 = vst.msk [vmem:[#allocation4 + $0x28] sm:$0xff] %vm773, %v760
        %780 = vst.msk [vmem:[#allocation4 + $0x30] sm:$0xff] %vm773, %v762
        %781 = vst.msk [vmem:[#allocation4 + $0x38] sm:$0xff] %vm773, %v764
        %s782 = scalar_lea.vmem [#allocation2], 32
        %v783 = vld [vmem:[%s782] sm:$0xff]
        %v784 = vld [vmem:[%s782 + $0x10] sm:$0xff]
        %v785 = vld [vmem:[%s782 + $0x20] sm:$0xff]
        %v786 = vld [vmem:[%s782 + $0x30] sm:$0xff]
        %v787 = vld [vmem:[%s782 + $0x40] sm:$0xff]
        %v788 = vld [vmem:[%s782 + $0x50] sm:$0xff]
        %v789 = vld [vmem:[%s782 + $0x60] sm:$0xff]
        %v790 = vld [vmem:[%s782 + $0x70] sm:$0xff]
        %799 = vrot.lane.b32.xlu0 %v783, 24
        %v800 = vpop.permute.xlu0 %799
        %801 = vrot.lane.b32.xlu0 %v784, 24
        %v802 = vpop.permute.xlu0 %801
        %803 = vrot.lane.b32.xlu0 %v785, 24
        %v804 = vpop.permute.xlu0 %803
        %805 = vrot.lane.b32.xlu0 %v786, 24
        %v806 = vpop.permute.xlu0 %805
        %807 = vrot.lane.b32.xlu0 %v787, 24
        %v808 = vpop.permute.xlu0 %807
        %809 = vrot.lane.b32.xlu0 %v788, 24
        %v810 = vpop.permute.xlu0 %809
        %811 = vrot.lane.b32.xlu0 %v789, 24
        %v812 = vpop.permute.xlu0 %811
        %813 = vrot.lane.b32.xlu0 %v790, 24
        %v814 = vpop.permute.xlu0 %813
        %vm823 = vcmask 228544
        %824 = vst.msk [vmem:[#allocation4] sm:$0xff] %vm823, %v800
        %825 = vst.msk [vmem:[#allocation4 + $0x8] sm:$0xff] %vm823, %v802
        %826 = vst.msk [vmem:[#allocation4 + $0x10] sm:$0xff] %vm823, %v804
        %827 = vst.msk [vmem:[#allocation4 + $0x18] sm:$0xff] %vm823, %v806
        %828 = vst.msk [vmem:[#allocation4 + $0x20] sm:$0xff] %vm823, %v808
        %829 = vst.msk [vmem:[#allocation4 + $0x28] sm:$0xff] %vm823, %v810
        %830 = vst.msk [vmem:[#allocation4 + $0x30] sm:$0xff] %vm823, %v812
        %831 = vst.msk [vmem:[#allocation4 + $0x38] sm:$0xff] %vm823, %v814
        %v832 = vld [vmem:[%s782 + $0x1] sm:$0xff]
        %v833 = vld [vmem:[%s782 + $0x11] sm:$0xff]
        %v834 = vld [vmem:[%s782 + $0x21] sm:$0xff]
        %v835 = vld [vmem:[%s782 + $0x31] sm:$0xff]
        %v836 = vld [vmem:[%s782 + $0x41] sm:$0xff]
        %v837 = vld [vmem:[%s782 + $0x51] sm:$0xff]
        %v838 = vld [vmem:[%s782 + $0x61] sm:$0xff]
        %v839 = vld [vmem:[%s782 + $0x71] sm:$0xff]
        %848 = vrot.lane.b32.xlu0 %v832, 28
        %v849 = vpop.permute.xlu0 %848
        %850 = vrot.lane.b32.xlu0 %v833, 28
        %v851 = vpop.permute.xlu0 %850
        %852 = vrot.lane.b32.xlu0 %v834, 28
        %v853 = vpop.permute.xlu0 %852
        %854 = vrot.lane.b32.xlu0 %v835, 28
        %v855 = vpop.permute.xlu0 %854
        %856 = vrot.lane.b32.xlu0 %v836, 28
        %v857 = vpop.permute.xlu0 %856
        %858 = vrot.lane.b32.xlu0 %v837, 28
        %v859 = vpop.permute.xlu0 %858
        %860 = vrot.lane.b32.xlu0 %v838, 28
        %v861 = vpop.permute.xlu0 %860
        %862 = vrot.lane.b32.xlu0 %v839, 28
        %v863 = vpop.permute.xlu0 %862
        %vm872 = vcmask 261344
        %873 = vst.msk [vmem:[#allocation4] sm:$0xff] %vm872, %v849
        %874 = vst.msk [vmem:[#allocation4 + $0x8] sm:$0xff] %vm872, %v851
        %875 = vst.msk [vmem:[#allocation4 + $0x10] sm:$0xff] %vm872, %v853
        %876 = vst.msk [vmem:[#allocation4 + $0x18] sm:$0xff] %vm872, %v855
        %877 = vst.msk [vmem:[#allocation4 + $0x20] sm:$0xff] %vm872, %v857
        %878 = vst.msk [vmem:[#allocation4 + $0x28] sm:$0xff] %vm872, %v859
        %879 = vst.msk [vmem:[#allocation4 + $0x30] sm:$0xff] %vm872, %v861
        %880 = vst.msk [vmem:[#allocation4 + $0x38] sm:$0xff] %vm872, %v863
        %v881 = vld [vmem:[%s782 + $0x2] sm:$0xff]
        %v882 = vld [vmem:[%s782 + $0x12] sm:$0xff]
        %v883 = vld [vmem:[%s782 + $0x22] sm:$0xff]
        %v884 = vld [vmem:[%s782 + $0x32] sm:$0xff]
        %v885 = vld [vmem:[%s782 + $0x42] sm:$0xff]
        %v886 = vld [vmem:[%s782 + $0x52] sm:$0xff]
        %v887 = vld [vmem:[%s782 + $0x62] sm:$0xff]
        %v888 = vld [vmem:[%s782 + $0x72] sm:$0xff]
        %897 = vrot.lane.b32.xlu0 %v881, 32
        %v898 = vpop.permute.xlu0 %897
        %899 = vrot.lane.b32.xlu0 %v882, 32
        %v900 = vpop.permute.xlu0 %899
        %901 = vrot.lane.b32.xlu0 %v883, 32
        %v902 = vpop.permute.xlu0 %901
        %903 = vrot.lane.b32.xlu0 %v884, 32
        %v904 = vpop.permute.xlu0 %903
        %905 = vrot.lane.b32.xlu0 %v885, 32
        %v906 = vpop.permute.xlu0 %905
        %907 = vrot.lane.b32.xlu0 %v886, 32
        %v908 = vpop.permute.xlu0 %907
        %909 = vrot.lane.b32.xlu0 %v887, 32
        %v910 = vpop.permute.xlu0 %909
        %911 = vrot.lane.b32.xlu0 %v888, 32
        %v912 = vpop.permute.xlu0 %911
        %vm921 = vcmask 294144
        %922 = vst.msk [vmem:[#allocation4] sm:$0xff] %vm921, %v898
        %923 = vst.msk [vmem:[#allocation4 + $0x8] sm:$0xff] %vm921, %v900
        %924 = vst.msk [vmem:[#allocation4 + $0x10] sm:$0xff] %vm921, %v902
        %925 = vst.msk [vmem:[#allocation4 + $0x18] sm:$0xff] %vm921, %v904
        %926 = vst.msk [vmem:[#allocation4 + $0x20] sm:$0xff] %vm921, %v906
        %927 = vst.msk [vmem:[#allocation4 + $0x28] sm:$0xff] %vm921, %v908
        %928 = vst.msk [vmem:[#allocation4 + $0x30] sm:$0xff] %vm921, %v910
        %929 = vst.msk [vmem:[#allocation4 + $0x38] sm:$0xff] %vm921, %v912
        %v930 = vld [vmem:[#allocation4] sm:$0xff]
        %v931 = vld [vmem:[#allocation4 + $0x8] sm:$0xff]
        %v932 = vld [vmem:[#allocation4 + $0x10] sm:$0xff]
        %v933 = vld [vmem:[#allocation4 + $0x18] sm:$0xff]
        %v934 = vld [vmem:[#allocation4 + $0x20] sm:$0xff]
        %v935 = vld [vmem:[#allocation4 + $0x28] sm:$0xff]
        %v936 = vld [vmem:[#allocation4 + $0x30] sm:$0xff]
        %v937 = vld [vmem:[#allocation4 + $0x38] sm:$0xff]
        %v938 = vld [vmem:[%s2] sm:$0xff]
        %v939 = vld [vmem:[%s2 + $0x8] sm:$0xff]
        %v940 = vld [vmem:[%s2 + $0x10] sm:$0xff]
        %v941 = vld [vmem:[%s2 + $0x18] sm:$0xff]
        %v942 = vld [vmem:[%s2 + $0x20] sm:$0xf]
        %v943 = vld [vmem:[%s3] sm:$0x1]
        %v945 = vperm.slane %v943, 0
        %vm947 = vcmask 293888
        %v949 = vsel %vm947, %v930, 0
        %v952 = vsel %vm947, %v931, 0
        %v955 = vsel %vm947, %v932, 0
        %v958 = vsel %vm947, %v933, 0
        %v961 = vsel %vm947, %v934, 0
        %v964 = vsel %vm947, %v935, 0
        %v967 = vsel %vm947, %v936, 0
        %v970 = vsel %vm947, %v937, 0
        %vm972 = vcmask 1043456
        %v974 = vsel %vm972, %v942, 0
        %976 = vmatpush.msra.mxu0 0.0
        %977 = vmatpush.msra.mxu0 0.0
        %978 = vmatpush.msra.mxu0 0.0
        %979 = vmatpush.msra.mxu0 0.0
        %980 = vmatpush.msra.mxu0 0.0
        %981 = vmatpush.msra.mxu0 0.0
        %982 = vmatpush.msra.mxu0 0.0
        %983 = vmatpush.msra.mxu0 0.0
        %984 = vmatpush.msra.mxu0 0.0
        %985 = vmatpush.msra.mxu0 0.0
        %986 = vmatpush.msra.mxu0 0.0
        %987 = vmatpush.msra.mxu0 %v974
        %988 = vmatpush.msra.mxu0 %v941
        %989 = vmatpush.msra.mxu0 %v940
        %990 = vmatpush.msra.mxu0 %v939
        %991 = vmatpush.msra.mxu0 %v938
        %992 = vmatmul.f32.gmra.mxu0 %v949
        %v993 = vpop.f32.mrf.mxu0
        %v994 = vadd.f32 %v945, %v993
        %995 = vmatmul.f32.gmra.mxu0 %v952
        %v996 = vpop.f32.mrf.mxu0
        %v997 = vadd.f32 %v945, %v996
        %998 = vmatmul.f32.gmra.mxu0 %v955
        %v999 = vpop.f32.mrf.mxu0
        %v1000 = vadd.f32 %v945, %v999
        %1001 = vmatmul.f32.gmra.mxu0 %v958
        %v1002 = vpop.f32.mrf.mxu0
        %v1003 = vadd.f32 %v945, %v1002
        %1004 = vmatmul.f32.gmra.mxu0 %v961
        %v1005 = vpop.f32.mrf.mxu0
        %v1006 = vadd.f32 %v945, %v1005
        %1007 = vmatmul.f32.gmra.mxu0 %v964
        %v1008 = vpop.f32.mrf.mxu0
        %v1009 = vadd.f32 %v945, %v1008
        %1010 = vmatmul.f32.gmra.mxu0 %v967
        %v1011 = vpop.f32.mrf.mxu0
        %v1012 = vadd.f32 %v945, %v1011
        %1013 = vmatmul.f32.gmra.mxu0 %v970
        %v1014 = vpop.f32.mrf.mxu0
        %v1015 = vadd.f32 %v945, %v1014
        %1016 = vdwg.mxu0
        %v1017 = vsub.f32 0.0, %v994
        %v1018 = vsub.f32 0.0, %v997
        %v1019 = vsub.f32 0.0, %v1000
        %v1020 = vsub.f32 0.0, %v1003
        %v1021 = vsub.f32 0.0, %v1006
        %v1022 = vsub.f32 0.0, %v1009
        %v1023 = vsub.f32 0.0, %v1012
        %v1024 = vsub.f32 0.0, %v1015
        %v1025 = vmul.f32 %v1017, 1.442695
        %v1026 = vpow.pop %v1025
        %v1027 = vmul.f32 %v1018, 1.442695
        %v1028 = vpow.pop %v1027
        %v1029 = vmul.f32 %v1019, 1.442695
        %v1030 = vpow.pop %v1029
        %v1031 = vmul.f32 %v1020, 1.442695
        %v1032 = vpow.pop %v1031
        %v1033 = vmul.f32 %v1021, 1.442695
        %v1034 = vpow.pop %v1033
        %v1035 = vmul.f32 %v1022, 1.442695
        %v1036 = vpow.pop %v1035
        %v1037 = vmul.f32 %v1023, 1.442695
        %v1038 = vpow.pop %v1037
        %v1039 = vmul.f32 %v1024, 1.442695
        %v1040 = vpow.pop %v1039
        %v1041 = vadd.f32 %v1026, 1.0
        %v1042 = vadd.f32 %v1028, 1.0
        %v1043 = vadd.f32 %v1030, 1.0
        %v1044 = vadd.f32 %v1032, 1.0
        %v1045 = vadd.f32 %v1034, 1.0
        %v1046 = vadd.f32 %v1036, 1.0
        %v1047 = vadd.f32 %v1038, 1.0
        %v1048 = vadd.f32 %v1040, 1.0
        %v1049 = vrcp.pop %v1041
        %v1050 = vmul.f32 %v1041, %v1049
        %v1051 = vsub.f32 1.0, %v1050
        %v1052 = vmul.f32 %v1049, %v1051
        %v1053 = vadd.f32 %v1049, %v1052
        %vm1054 = vweird.f32 %v1041
        %vm1055 = vweird.f32 %v1049
        %vm1056 = vmor %vm1054, %vm1055
        %v1057 = vsel %vm1056, %v1049, %v1053
        %v1058 = vand.u32 2147483647, %v1041
        %vm1059 = vcmp.eq.f32.partialorder %v1058, 8.507059e+37
        %v1060 = vand.u32 %v1041, 2147483648
        %v1061 = vor.u32 1.1754944e-38, %v1060
        %v1062 = vsel %vm1059, %v1061, %v1057
        %v1063 = vmul.f32 1.0, %v1062
        %v1064 = vrcp.pop %v1042
        %v1065 = vmul.f32 %v1042, %v1064
        %v1066 = vsub.f32 1.0, %v1065
        %v1067 = vmul.f32 %v1064, %v1066
        %v1068 = vadd.f32 %v1064, %v1067
        %vm1069 = vweird.f32 %v1042
        %vm1070 = vweird.f32 %v1064
        %vm1071 = vmor %vm1069, %vm1070
        %v1072 = vsel %vm1071, %v1064, %v1068
        %v1073 = vand.u32 2147483647, %v1042
        %vm1074 = vcmp.eq.f32.partialorder %v1073, 8.507059e+37
        %v1075 = vand.u32 %v1042, 2147483648
        %v1076 = vor.u32 1.1754944e-38, %v1075
        %v1077 = vsel %vm1074, %v1076, %v1072
        %v1078 = vmul.f32 1.0, %v1077
        %v1079 = vrcp.pop %v1043
        %v1080 = vmul.f32 %v1043, %v1079
        %v1081 = vsub.f32 1.0, %v1080
        %v1082 = vmul.f32 %v1079, %v1081
        %v1083 = vadd.f32 %v1079, %v1082
        %vm1084 = vweird.f32 %v1043
        %vm1085 = vweird.f32 %v1079
        %vm1086 = vmor %vm1084, %vm1085
        %v1087 = vsel %vm1086, %v1079, %v1083
        %v1088 = vand.u32 2147483647, %v1043
        %vm1089 = vcmp.eq.f32.partialorder %v1088, 8.507059e+37
        %v1090 = vand.u32 %v1043, 2147483648
        %v1091 = vor.u32 1.1754944e-38, %v1090
        %v1092 = vsel %vm1089, %v1091, %v1087
        %v1093 = vmul.f32 1.0, %v1092
        %v1094 = vrcp.pop %v1044
        %v1095 = vmul.f32 %v1044, %v1094
        %v1096 = vsub.f32 1.0, %v1095
        %v1097 = vmul.f32 %v1094, %v1096
        %v1098 = vadd.f32 %v1094, %v1097
        %vm1099 = vweird.f32 %v1044
        %vm1100 = vweird.f32 %v1094
        %vm1101 = vmor %vm1099, %vm1100
        %v1102 = vsel %vm1101, %v1094, %v1098
        %v1103 = vand.u32 2147483647, %v1044
        %vm1104 = vcmp.eq.f32.partialorder %v1103, 8.507059e+37
        %v1105 = vand.u32 %v1044, 2147483648
        %v1106 = vor.u32 1.1754944e-38, %v1105
        %v1107 = vsel %vm1104, %v1106, %v1102
        %v1108 = vmul.f32 1.0, %v1107
        %v1109 = vrcp.pop %v1045
        %v1110 = vmul.f32 %v1045, %v1109
        %v1111 = vsub.f32 1.0, %v1110
        %v1112 = vmul.f32 %v1109, %v1111
        %v1113 = vadd.f32 %v1109, %v1112
        %vm1114 = vweird.f32 %v1045
        %vm1115 = vweird.f32 %v1109
        %vm1116 = vmor %vm1114, %vm1115
        %v1117 = vsel %vm1116, %v1109, %v1113
        %v1118 = vand.u32 2147483647, %v1045
        %vm1119 = vcmp.eq.f32.partialorder %v1118, 8.507059e+37
        %v1120 = vand.u32 %v1045, 2147483648
        %v1121 = vor.u32 1.1754944e-38, %v1120
        %v1122 = vsel %vm1119, %v1121, %v1117
        %v1123 = vmul.f32 1.0, %v1122
        %v1124 = vrcp.pop %v1046
        %v1125 = vmul.f32 %v1046, %v1124
        %v1126 = vsub.f32 1.0, %v1125
        %v1127 = vmul.f32 %v1124, %v1126
        %v1128 = vadd.f32 %v1124, %v1127
        %vm1129 = vweird.f32 %v1046
        %vm1130 = vweird.f32 %v1124
        %vm1131 = vmor %vm1129, %vm1130
        %v1132 = vsel %vm1131, %v1124, %v1128
        %v1133 = vand.u32 2147483647, %v1046
        %vm1134 = vcmp.eq.f32.partialorder %v1133, 8.507059e+37
        %v1135 = vand.u32 %v1046, 2147483648
        %v1136 = vor.u32 1.1754944e-38, %v1135
        %v1137 = vsel %vm1134, %v1136, %v1132
        %v1138 = vmul.f32 1.0, %v1137
        %v1139 = vrcp.pop %v1047
        %v1140 = vmul.f32 %v1047, %v1139
        %v1141 = vsub.f32 1.0, %v1140
        %v1142 = vmul.f32 %v1139, %v1141
        %v1143 = vadd.f32 %v1139, %v1142
        %vm1144 = vweird.f32 %v1047
        %vm1145 = vweird.f32 %v1139
        %vm1146 = vmor %vm1144, %vm1145
        %v1147 = vsel %vm1146, %v1139, %v1143
        %v1148 = vand.u32 2147483647, %v1047
        %vm1149 = vcmp.eq.f32.partialorder %v1148, 8.507059e+37
        %v1150 = vand.u32 %v1047, 2147483648
        %v1151 = vor.u32 1.1754944e-38, %v1150
        %v1152 = vsel %vm1149, %v1151, %v1147
        %v1153 = vmul.f32 1.0, %v1152
        %v1154 = vrcp.pop %v1048
        %v1155 = vmul.f32 %v1048, %v1154
        %v1156 = vsub.f32 1.0, %v1155
        %v1157 = vmul.f32 %v1154, %v1156
        %v1158 = vadd.f32 %v1154, %v1157
        %vm1159 = vweird.f32 %v1048
        %vm1160 = vweird.f32 %v1154
        %vm1161 = vmor %vm1159, %vm1160
        %v1162 = vsel %vm1161, %v1154, %v1158
        %v1163 = vand.u32 2147483647, %v1048
        %vm1164 = vcmp.eq.f32.partialorder %v1163, 8.507059e+37
        %v1165 = vand.u32 %v1048, 2147483648
        %v1166 = vor.u32 1.1754944e-38, %v1165
        %v1167 = vsel %vm1164, %v1166, %v1162
        %v1168 = vmul.f32 1.0, %v1167
        %v1169 = vmul.f32 %v994, %v1063
        %v1170 = vmul.f32 %v997, %v1078
        %v1171 = vmul.f32 %v1000, %v1093
        %v1172 = vmul.f32 %v1003, %v1108
        %v1173 = vmul.f32 %v1006, %v1123
        %v1174 = vmul.f32 %v1009, %v1138
        %v1175 = vmul.f32 %v1012, %v1153
        %v1176 = vmul.f32 %v1015, %v1168
        %v1177 = vld [vmem:[%s371] sm:$0x1]
        %v1178 = vsub.f32 0.0, %v1177
        %v1179 = vmul.f32 %v1178, 1.442695
        %v1180 = vpow.pop %v1179
        %v1181 = vadd.f32 %v1180, 1.0
        %v1182 = vrcp.pop %v1181
        %v1183 = vmul.f32 %v1181, %v1182
        %v1184 = vsub.f32 1.0, %v1183
        %v1185 = vmul.f32 %v1182, %v1184
        %v1186 = vadd.f32 %v1182, %v1185
        %vm1187 = vweird.f32 %v1181
        %vm1188 = vweird.f32 %v1182
        %vm1189 = vmor %vm1187, %vm1188
        %v1190 = vsel %vm1189, %v1182, %v1186
        %v1191 = vand.u32 2147483647, %v1181
        %vm1192 = vcmp.eq.f32.partialorder %v1191, 8.507059e+37
        %v1193 = vand.u32 %v1181, 2147483648
        %v1194 = vor.u32 1.1754944e-38, %v1193
        %v1195 = vsel %vm1192, %v1194, %v1190
        %v1196 = vmul.f32 1.0, %v1195
        %v1197 = vmul.f32 %v1177, %v1196
        %v1198 = vld [vmem:[%s4] sm:$0xff]
        %v1199 = vld [vmem:[%s4 + $0x8] sm:$0xff]
        %v1200 = vld [vmem:[%s4 + $0x10] sm:$0xff]
        %v1201 = vld [vmem:[%s4 + $0x18] sm:$0xff]
        %v1202 = vld [vmem:[%s5] sm:$0x1]
        %vm1203 = vcmask 261120
        %v1205 = vsel %vm1203, %v1197, 0
        %1207 = vmatpush.msra.mxu0 0.0
        %1208 = vmatpush.msra.mxu0 0.0
        %1209 = vmatpush.msra.mxu0 0.0
        %1210 = vmatpush.msra.mxu0 0.0
        %1211 = vmatpush.msra.mxu0 0.0
        %1212 = vmatpush.msra.mxu0 0.0
        %1213 = vmatpush.msra.mxu0 0.0
        %1214 = vmatpush.msra.mxu0 0.0
        %1215 = vmatpush.msra.mxu0 0.0
        %1216 = vmatpush.msra.mxu0 0.0
        %1217 = vmatpush.msra.mxu0 0.0
        %1218 = vmatpush.msra.mxu0 0.0
        %1219 = vmatpush.msra.mxu0 %v1201
        %1220 = vmatpush.msra.mxu0 %v1200
        %1221 = vmatpush.msra.mxu0 %v1199
        %1222 = vmatpush.msra.mxu0 %v1198
        %1223 = vmatmul.f32.gmra.mxu0 %v1205
        %v1224 = vpop.f32.mrf.mxu0
        %v1225 = vadd.f32 %v1202, %v1224
        %1226 = vdwg.mxu0
        %v1227 = vperm.slane %v1225, 0
        %v1228 = vadd.f32 %v1169, %v1227
        %v1229 = vadd.f32 %v1170, %v1227
        %v1230 = vadd.f32 %v1171, %v1227
        %v1231 = vadd.f32 %v1172, %v1227
        %v1232 = vadd.f32 %v1173, %v1227
        %v1233 = vadd.f32 %v1174, %v1227
        %v1234 = vadd.f32 %v1175, %v1227
        %v1235 = vadd.f32 %v1176, %v1227
        %vm1236 = vcmask 64512
        %1237 = vst.msk [vmem:[#allocation3] sm:$0xff] %vm1236, 0.0
        %vm1238 = vcmask 58368
        %1239 = vst.msk [vmem:[#allocation3 + $0x8] sm:$0x3] %vm1238, 0.0
        %s1240 = scalar_lea.vmem [#allocation3], 144
        %1241 = vst.msk [vmem:[%s1240] sm:$0xff] %vm1236, 0.0
        %1242 = vst.msk [vmem:[%s1240 + $0x8] sm:$0x3] %vm1238, 0.0
        %vm1243 = vcmask 57344
        %1244 = vst.msk [vmem:[#allocation3] sm:$0x1] %vm1243, 0.0
        %1245 = vst.msk [vmem:[#allocation3 + $0x10] sm:$0x1] %vm1243, 0.0
        %1246 = vst.msk [vmem:[#allocation3 + $0x20] sm:$0x1] %vm1243, 0.0
        %1247 = vst.msk [vmem:[#allocation3 + $0x30] sm:$0x1] %vm1243, 0.0
        %1248 = vst.msk [vmem:[#allocation3 + $0x40] sm:$0x1] %vm1243, 0.0
        %1249 = vst.msk [vmem:[#allocation3 + $0x50] sm:$0x1] %vm1243, 0.0
        %1250 = vst.msk [vmem:[#allocation3 + $0x60] sm:$0x1] %vm1243, 0.0
        %1251 = vst.msk [vmem:[#allocation3 + $0x70] sm:$0x1] %vm1243, 0.0
        %1252 = vst.msk [vmem:[#allocation3 + $0x80] sm:$0x1] %vm1243, 0.0
        %1253 = vst.msk [vmem:[#allocation3 + $0x90] sm:$0x1] %vm1243, 0.0
        %1254 = vst.msk [vmem:[#allocation3 + $0x9] sm:$0x1] %vm1243, 0.0
        %1255 = vst.msk [vmem:[#allocation3 + $0x19] sm:$0x1] %vm1243, 0.0
        %1256 = vst.msk [vmem:[#allocation3 + $0x29] sm:$0x1] %vm1243, 0.0
        %1257 = vst.msk [vmem:[#allocation3 + $0x39] sm:$0x1] %vm1243, 0.0
        %1258 = vst.msk [vmem:[#allocation3 + $0x49] sm:$0x1] %vm1243, 0.0
        %1259 = vst.msk [vmem:[#allocation3 + $0x59] sm:$0x1] %vm1243, 0.0
        %1260 = vst.msk [vmem:[#allocation3 + $0x69] sm:$0x1] %vm1243, 0.0
        %1261 = vst.msk [vmem:[#allocation3 + $0x79] sm:$0x1] %vm1243, 0.0
        %1262 = vst.msk [vmem:[#allocation3 + $0x89] sm:$0x1] %vm1243, 0.0
        %1263 = vst.msk [vmem:[#allocation3 + $0x99] sm:$0x1] %vm1243, 0.0
        %s1264 = scalar_lea.vmem [#allocation3], 16
        %1265 = vst.msk [vmem:[%s1264 + $0x1] sm:$0xff] %vm1236, %v1228
        %1266 = vst.msk [vmem:[%s1264 + $0x11] sm:$0xff] %vm1236, %v1229
        %1267 = vst.msk [vmem:[%s1264 + $0x21] sm:$0xff] %vm1236, %v1230
        %1268 = vst.msk [vmem:[%s1264 + $0x31] sm:$0xff] %vm1236, %v1231
        %1269 = vst.msk [vmem:[%s1264 + $0x41] sm:$0xff] %vm1236, %v1232
        %1270 = vst.msk [vmem:[%s1264 + $0x51] sm:$0xff] %vm1236, %v1233
        %1271 = vst.msk [vmem:[%s1264 + $0x61] sm:$0xff] %vm1236, %v1234
        %1272 = vst.msk [vmem:[%s1264 + $0x71] sm:$0xff] %vm1236, %v1235
        %v1273 = vld [vmem:[#allocation3] sm:$0xff]
        %v1274 = vld [vmem:[#allocation3 + $0x10] sm:$0xff]
        %v1275 = vld [vmem:[#allocation3 + $0x20] sm:$0xff]
        %v1276 = vld [vmem:[#allocation3 + $0x30] sm:$0xff]
        %v1277 = vld [vmem:[#allocation3 + $0x40] sm:$0xff]
        %v1278 = vld [vmem:[#allocation3 + $0x50] sm:$0xff]
        %v1279 = vld [vmem:[#allocation3 + $0x60] sm:$0xff]
        %v1280 = vld [vmem:[#allocation3 + $0x70] sm:$0xff]
        %1281 = vst.msk [vmem:[#allocation5] sm:$0xff] %vm1236, %v1273
        %1282 = vst.msk [vmem:[#allocation5 + $0x8] sm:$0xff] %vm1236, %v1274
        %1283 = vst.msk [vmem:[#allocation5 + $0x10] sm:$0xff] %vm1236, %v1275
        %1284 = vst.msk [vmem:[#allocation5 + $0x18] sm:$0xff] %vm1236, %v1276
        %1285 = vst.msk [vmem:[#allocation5 + $0x20] sm:$0xff] %vm1236, %v1277
        %1286 = vst.msk [vmem:[#allocation5 + $0x28] sm:$0xff] %vm1236, %v1278
        %1287 = vst.msk [vmem:[#allocation5 + $0x30] sm:$0xff] %vm1236, %v1279
        %1288 = vst.msk [vmem:[#allocation5 + $0x38] sm:$0xff] %vm1236, %v1280
        %v1289 = vld [vmem:[#allocation3 + $0x1] sm:$0xff]
        %v1290 = vld [vmem:[#allocation3 + $0x11] sm:$0xff]
        %v1291 = vld [vmem:[#allocation3 + $0x21] sm:$0xff]
        %v1292 = vld [vmem:[#allocation3 + $0x31] sm:$0xff]
        %v1293 = vld [vmem:[#allocation3 + $0x41] sm:$0xff]
        %v1294 = vld [vmem:[#allocation3 + $0x51] sm:$0xff]
        %v1295 = vld [vmem:[#allocation3 + $0x61] sm:$0xff]
        %v1296 = vld [vmem:[#allocation3 + $0x71] sm:$0xff]
        %1305 = vrot.lane.b32.xlu0 %v1289, 8
        %v1306 = vpop.permute.xlu0 %1305
        %1307 = vrot.lane.b32.xlu0 %v1290, 8
        %v1308 = vpop.permute.xlu0 %1307
        %1309 = vrot.lane.b32.xlu0 %v1291, 8
        %v1310 = vpop.permute.xlu0 %1309
        %1311 = vrot.lane.b32.xlu0 %v1292, 8
        %v1312 = vpop.permute.xlu0 %1311
        %1313 = vrot.lane.b32.xlu0 %v1293, 8
        %v1314 = vpop.permute.xlu0 %1313
        %1315 = vrot.lane.b32.xlu0 %v1294, 8
        %v1316 = vpop.permute.xlu0 %1315
        %1317 = vrot.lane.b32.xlu0 %v1295, 8
        %v1318 = vpop.permute.xlu0 %1317
        %1319 = vrot.lane.b32.xlu0 %v1296, 8
        %v1320 = vpop.permute.xlu0 %1319
        %vm1329 = vcmask 130112
        %1330 = vst.msk [vmem:[#allocation5] sm:$0xff] %vm1329, %v1306
        %1331 = vst.msk [vmem:[#allocation5 + $0x8] sm:$0xff] %vm1329, %v1308
        %1332 = vst.msk [vmem:[#allocation5 + $0x10] sm:$0xff] %vm1329, %v1310
        %1333 = vst.msk [vmem:[#allocation5 + $0x18] sm:$0xff] %vm1329, %v1312
        %1334 = vst.msk [vmem:[#allocation5 + $0x20] sm:$0xff] %vm1329, %v1314
        %1335 = vst.msk [vmem:[#allocation5 + $0x28] sm:$0xff] %vm1329, %v1316
        %1336 = vst.msk [vmem:[#allocation5 + $0x30] sm:$0xff] %vm1329, %v1318
        %1337 = vst.msk [vmem:[#allocation5 + $0x38] sm:$0xff] %vm1329, %v1320
        %v1338 = vld [vmem:[#allocation3 + $0x2] sm:$0xff]
        %v1339 = vld [vmem:[#allocation3 + $0x12] sm:$0xff]
        %v1340 = vld [vmem:[#allocation3 + $0x22] sm:$0xff]
        %v1341 = vld [vmem:[#allocation3 + $0x32] sm:$0xff]
        %v1342 = vld [vmem:[#allocation3 + $0x42] sm:$0xff]
        %v1343 = vld [vmem:[#allocation3 + $0x52] sm:$0xff]
        %v1344 = vld [vmem:[#allocation3 + $0x62] sm:$0xff]
        %v1345 = vld [vmem:[#allocation3 + $0x72] sm:$0xff]
        %1354 = vrot.lane.b32.xlu0 %v1338, 16
        %v1355 = vpop.permute.xlu0 %1354
        %1356 = vrot.lane.b32.xlu0 %v1339, 16
        %v1357 = vpop.permute.xlu0 %1356
        %1358 = vrot.lane.b32.xlu0 %v1340, 16
        %v1359 = vpop.permute.xlu0 %1358
        %1360 = vrot.lane.b32.xlu0 %v1341, 16
        %v1361 = vpop.permute.xlu0 %1360
        %1362 = vrot.lane.b32.xlu0 %v1342, 16
        %v1363 = vpop.permute.xlu0 %1362
        %1364 = vrot.lane.b32.xlu0 %v1343, 16
        %v1365 = vpop.permute.xlu0 %1364
        %1366 = vrot.lane.b32.xlu0 %v1344, 16
        %v1367 = vpop.permute.xlu0 %1366
        %1368 = vrot.lane.b32.xlu0 %v1345, 16
        %v1369 = vpop.permute.xlu0 %1368
        %vm1378 = vcmask 195712
        %1379 = vst.msk [vmem:[#allocation5] sm:$0xff] %vm1378, %v1355
        %1380 = vst.msk [vmem:[#allocation5 + $0x8] sm:$0xff] %vm1378, %v1357
        %1381 = vst.msk [vmem:[#allocation5 + $0x10] sm:$0xff] %vm1378, %v1359
        %1382 = vst.msk [vmem:[#allocation5 + $0x18] sm:$0xff] %vm1378, %v1361
        %1383 = vst.msk [vmem:[#allocation5 + $0x20] sm:$0xff] %vm1378, %v1363
        %1384 = vst.msk [vmem:[#allocation5 + $0x28] sm:$0xff] %vm1378, %v1365
        %1385 = vst.msk [vmem:[#allocation5 + $0x30] sm:$0xff] %vm1378, %v1367
        %1386 = vst.msk [vmem:[#allocation5 + $0x38] sm:$0xff] %vm1378, %v1369
        %v1387 = vld [vmem:[%s1264] sm:$0xff]
        %v1388 = vld [vmem:[%s1264 + $0x10] sm:$0xff]
        %v1389 = vld [vmem:[%s1264 + $0x20] sm:$0xff]
        %v1390 = vld [vmem:[%s1264 + $0x30] sm:$0xff]
        %v1391 = vld [vmem:[%s1264 + $0x40] sm:$0xff]
        %v1392 = vld [vmem:[%s1264 + $0x50] sm:$0xff]
        %v1393 = vld [vmem:[%s1264 + $0x60] sm:$0xff]
        %v1394 = vld [vmem:[%s1264 + $0x70] sm:$0xff]
        %1403 = vrot.lane.b32.xlu0 %v1387, 24
        %v1404 = vpop.permute.xlu0 %1403
        %1405 = vrot.lane.b32.xlu0 %v1388, 24
        %v1406 = vpop.permute.xlu0 %1405
        %1407 = vrot.lane.b32.xlu0 %v1389, 24
        %v1408 = vpop.permute.xlu0 %1407
        %1409 = vrot.lane.b32.xlu0 %v1390, 24
        %v1410 = vpop.permute.xlu0 %1409
        %1411 = vrot.lane.b32.xlu0 %v1391, 24
        %v1412 = vpop.permute.xlu0 %1411
        %1413 = vrot.lane.b32.xlu0 %v1392, 24
        %v1414 = vpop.permute.xlu0 %1413
        %1415 = vrot.lane.b32.xlu0 %v1393, 24
        %v1416 = vpop.permute.xlu0 %1415
        %1417 = vrot.lane.b32.xlu0 %v1394, 24
        %v1418 = vpop.permute.xlu0 %1417
        %vm1427 = vcmask 261312
        %1428 = vst.msk [vmem:[#allocation5] sm:$0xff] %vm1427, %v1404
        %1429 = vst.msk [vmem:[#allocation5 + $0x8] sm:$0xff] %vm1427, %v1406
        %1430 = vst.msk [vmem:[#allocation5 + $0x10] sm:$0xff] %vm1427, %v1408
        %1431 = vst.msk [vmem:[#allocation5 + $0x18] sm:$0xff] %vm1427, %v1410
        %1432 = vst.msk [vmem:[#allocation5 + $0x20] sm:$0xff] %vm1427, %v1412
        %1433 = vst.msk [vmem:[#allocation5 + $0x28] sm:$0xff] %vm1427, %v1414
        %1434 = vst.msk [vmem:[#allocation5 + $0x30] sm:$0xff] %vm1427, %v1416
        %1435 = vst.msk [vmem:[#allocation5 + $0x38] sm:$0xff] %vm1427, %v1418
        %v1436 = vld [vmem:[%s1264 + $0x1] sm:$0xff]
        %v1437 = vld [vmem:[%s1264 + $0x11] sm:$0xff]
        %v1438 = vld [vmem:[%s1264 + $0x21] sm:$0xff]
        %v1439 = vld [vmem:[%s1264 + $0x31] sm:$0xff]
        %v1440 = vld [vmem:[%s1264 + $0x41] sm:$0xff]
        %v1441 = vld [vmem:[%s1264 + $0x51] sm:$0xff]
        %v1442 = vld [vmem:[%s1264 + $0x61] sm:$0xff]
        %v1443 = vld [vmem:[%s1264 + $0x71] sm:$0xff]
        %1452 = vrot.lane.b32.xlu0 %v1436, 32
        %v1453 = vpop.permute.xlu0 %1452
        %1454 = vrot.lane.b32.xlu0 %v1437, 32
        %v1455 = vpop.permute.xlu0 %1454
        %1456 = vrot.lane.b32.xlu0 %v1438, 32
        %v1457 = vpop.permute.xlu0 %1456
        %1458 = vrot.lane.b32.xlu0 %v1439, 32
        %v1459 = vpop.permute.xlu0 %1458
        %1460 = vrot.lane.b32.xlu0 %v1440, 32
        %v1461 = vpop.permute.xlu0 %1460
        %1462 = vrot.lane.b32.xlu0 %v1441, 32
        %v1463 = vpop.permute.xlu0 %1462
        %1464 = vrot.lane.b32.xlu0 %v1442, 32
        %v1465 = vpop.permute.xlu0 %1464
        %1466 = vrot.lane.b32.xlu0 %v1443, 32
        %v1467 = vpop.permute.xlu0 %1466
        %vm1476 = vcmask 326912
        %1477 = vst.msk [vmem:[#allocation5] sm:$0xff] %vm1476, %v1453
        %1478 = vst.msk [vmem:[#allocation5 + $0x8] sm:$0xff] %vm1476, %v1455
        %1479 = vst.msk [vmem:[#allocation5 + $0x10] sm:$0xff] %vm1476, %v1457
        %1480 = vst.msk [vmem:[#allocation5 + $0x18] sm:$0xff] %vm1476, %v1459
        %1481 = vst.msk [vmem:[#allocation5 + $0x20] sm:$0xff] %vm1476, %v1461
        %1482 = vst.msk [vmem:[#allocation5 + $0x28] sm:$0xff] %vm1476, %v1463
        %1483 = vst.msk [vmem:[#allocation5 + $0x30] sm:$0xff] %vm1476, %v1465
        %1484 = vst.msk [vmem:[#allocation5 + $0x38] sm:$0xff] %vm1476, %v1467
        %v1485 = vld [vmem:[%s1264 + $0x2] sm:$0xff]
        %v1486 = vld [vmem:[%s1264 + $0x12] sm:$0xff]
        %v1487 = vld [vmem:[%s1264 + $0x22] sm:$0xff]
        %v1488 = vld [vmem:[%s1264 + $0x32] sm:$0xff]
        %v1489 = vld [vmem:[%s1264 + $0x42] sm:$0xff]
        %v1490 = vld [vmem:[%s1264 + $0x52] sm:$0xff]
        %v1491 = vld [vmem:[%s1264 + $0x62] sm:$0xff]
        %v1492 = vld [vmem:[%s1264 + $0x72] sm:$0xff]
        %1501 = vrot.lane.b32.xlu0 %v1485, 40
        %v1502 = vpop.permute.xlu0 %1501
        %1503 = vrot.lane.b32.xlu0 %v1486, 40
        %v1504 = vpop.permute.xlu0 %1503
        %1505 = vrot.lane.b32.xlu0 %v1487, 40
        %v1506 = vpop.permute.xlu0 %1505
        %1507 = vrot.lane.b32.xlu0 %v1488, 40
        %v1508 = vpop.permute.xlu0 %1507
        %1509 = vrot.lane.b32.xlu0 %v1489, 40
        %v1510 = vpop.permute.xlu0 %1509
        %1511 = vrot.lane.b32.xlu0 %v1490, 40
        %v1512 = vpop.permute.xlu0 %1511
        %1513 = vrot.lane.b32.xlu0 %v1491, 40
        %v1514 = vpop.permute.xlu0 %1513
        %1515 = vrot.lane.b32.xlu0 %v1492, 40
        %v1516 = vpop.permute.xlu0 %1515
        %vm1525 = vcmask 392512
        %1526 = vst.msk [vmem:[#allocation5] sm:$0xff] %vm1525, %v1502
        %1527 = vst.msk [vmem:[#allocation5 + $0x8] sm:$0xff] %vm1525, %v1504
        %1528 = vst.msk [vmem:[#allocation5 + $0x10] sm:$0xff] %vm1525, %v1506
        %1529 = vst.msk [vmem:[#allocation5 + $0x18] sm:$0xff] %vm1525, %v1508
        %1530 = vst.msk [vmem:[#allocation5 + $0x20] sm:$0xff] %vm1525, %v1510
        %1531 = vst.msk [vmem:[#allocation5 + $0x28] sm:$0xff] %vm1525, %v1512
        %1532 = vst.msk [vmem:[#allocation5 + $0x30] sm:$0xff] %vm1525, %v1514
        %1533 = vst.msk [vmem:[#allocation5 + $0x38] sm:$0xff] %vm1525, %v1516
        %s1534 = scalar_lea.vmem [#allocation3], 32
        %v1535 = vld [vmem:[%s1534] sm:$0xff]
        %v1536 = vld [vmem:[%s1534 + $0x10] sm:$0xff]
        %v1537 = vld [vmem:[%s1534 + $0x20] sm:$0xff]
        %v1538 = vld [vmem:[%s1534 + $0x30] sm:$0xff]
        %v1539 = vld [vmem:[%s1534 + $0x40] sm:$0xff]
        %v1540 = vld [vmem:[%s1534 + $0x50] sm:$0xff]
        %v1541 = vld [vmem:[%s1534 + $0x60] sm:$0xff]
        %v1542 = vld [vmem:[%s1534 + $0x70] sm:$0xff]
        %1551 = vrot.lane.b32.xlu0 %v1535, 48
        %v1552 = vpop.permute.xlu0 %1551
        %1553 = vrot.lane.b32.xlu0 %v1536, 48
        %v1554 = vpop.permute.xlu0 %1553
        %1555 = vrot.lane.b32.xlu0 %v1537, 48
        %v1556 = vpop.permute.xlu0 %1555
        %1557 = vrot.lane.b32.xlu0 %v1538, 48
        %v1558 = vpop.permute.xlu0 %1557
        %1559 = vrot.lane.b32.xlu0 %v1539, 48
        %v1560 = vpop.permute.xlu0 %1559
        %1561 = vrot.lane.b32.xlu0 %v1540, 48
        %v1562 = vpop.permute.xlu0 %1561
        %1563 = vrot.lane.b32.xlu0 %v1541, 48
        %v1564 = vpop.permute.xlu0 %1563
        %1565 = vrot.lane.b32.xlu0 %v1542, 48
        %v1566 = vpop.permute.xlu0 %1565
        %vm1575 = vcmask 458112
        %1576 = vst.msk [vmem:[#allocation5] sm:$0xff] %vm1575, %v1552
        %1577 = vst.msk [vmem:[#allocation5 + $0x8] sm:$0xff] %vm1575, %v1554
        %1578 = vst.msk [vmem:[#allocation5 + $0x10] sm:$0xff] %vm1575, %v1556
        %1579 = vst.msk [vmem:[#allocation5 + $0x18] sm:$0xff] %vm1575, %v1558
        %1580 = vst.msk [vmem:[#allocation5 + $0x20] sm:$0xff] %vm1575, %v1560
        %1581 = vst.msk [vmem:[#allocation5 + $0x28] sm:$0xff] %vm1575, %v1562
        %1582 = vst.msk [vmem:[#allocation5 + $0x30] sm:$0xff] %vm1575, %v1564
        %1583 = vst.msk [vmem:[#allocation5 + $0x38] sm:$0xff] %vm1575, %v1566
        %v1584 = vld [vmem:[%s1534 + $0x1] sm:$0xff]
        %v1585 = vld [vmem:[%s1534 + $0x11] sm:$0xff]
        %v1586 = vld [vmem:[%s1534 + $0x21] sm:$0xff]
        %v1587 = vld [vmem:[%s1534 + $0x31] sm:$0xff]
        %v1588 = vld [vmem:[%s1534 + $0x41] sm:$0xff]
        %v1589 = vld [vmem:[%s1534 + $0x51] sm:$0xff]
        %v1590 = vld [vmem:[%s1534 + $0x61] sm:$0xff]
        %v1591 = vld [vmem:[%s1534 + $0x71] sm:$0xff]
        %1600 = vrot.lane.b32.xlu0 %v1584, 56
        %v1601 = vpop.permute.xlu0 %1600
        %1602 = vrot.lane.b32.xlu0 %v1585, 56
        %v1603 = vpop.permute.xlu0 %1602
        %1604 = vrot.lane.b32.xlu0 %v1586, 56
        %v1605 = vpop.permute.xlu0 %1604
        %1606 = vrot.lane.b32.xlu0 %v1587, 56
        %v1607 = vpop.permute.xlu0 %1606
        %1608 = vrot.lane.b32.xlu0 %v1588, 56
        %v1609 = vpop.permute.xlu0 %1608
        %1610 = vrot.lane.b32.xlu0 %v1589, 56
        %v1611 = vpop.permute.xlu0 %1610
        %1612 = vrot.lane.b32.xlu0 %v1590, 56
        %v1613 = vpop.permute.xlu0 %1612
        %1614 = vrot.lane.b32.xlu0 %v1591, 56
        %v1615 = vpop.permute.xlu0 %1614
        %vm1624 = vcmask 523712
        %1625 = vst.msk [vmem:[#allocation5] sm:$0xff] %vm1624, %v1601
        %1626 = vst.msk [vmem:[#allocation5 + $0x8] sm:$0xff] %vm1624, %v1603
        %1627 = vst.msk [vmem:[#allocation5 + $0x10] sm:$0xff] %vm1624, %v1605
        %1628 = vst.msk [vmem:[#allocation5 + $0x18] sm:$0xff] %vm1624, %v1607
        %1629 = vst.msk [vmem:[#allocation5 + $0x20] sm:$0xff] %vm1624, %v1609
        %1630 = vst.msk [vmem:[#allocation5 + $0x28] sm:$0xff] %vm1624, %v1611
        %1631 = vst.msk [vmem:[#allocation5 + $0x30] sm:$0xff] %vm1624, %v1613
        %1632 = vst.msk [vmem:[#allocation5 + $0x38] sm:$0xff] %vm1624, %v1615
        %v1633 = vld [vmem:[%s1534 + $0x2] sm:$0xff]
        %v1634 = vld [vmem:[%s1534 + $0x12] sm:$0xff]
        %v1635 = vld [vmem:[%s1534 + $0x22] sm:$0xff]
        %v1636 = vld [vmem:[%s1534 + $0x32] sm:$0xff]
        %v1637 = vld [vmem:[%s1534 + $0x42] sm:$0xff]
        %v1638 = vld [vmem:[%s1534 + $0x52] sm:$0xff]
        %v1639 = vld [vmem:[%s1534 + $0x62] sm:$0xff]
        %v1640 = vld [vmem:[%s1534 + $0x72] sm:$0xff]
        %1649 = vrot.lane.b32.xlu0 %v1633, 64
        %v1650 = vpop.permute.xlu0 %1649
        %1651 = vrot.lane.b32.xlu0 %v1634, 64
        %v1652 = vpop.permute.xlu0 %1651
        %1653 = vrot.lane.b32.xlu0 %v1635, 64
        %v1654 = vpop.permute.xlu0 %1653
        %1655 = vrot.lane.b32.xlu0 %v1636, 64
        %v1656 = vpop.permute.xlu0 %1655
        %1657 = vrot.lane.b32.xlu0 %v1637, 64
        %v1658 = vpop.permute.xlu0 %1657
        %1659 = vrot.lane.b32.xlu0 %v1638, 64
        %v1660 = vpop.permute.xlu0 %1659
        %1661 = vrot.lane.b32.xlu0 %v1639, 64
        %v1662 = vpop.permute.xlu0 %1661
        %1663 = vrot.lane.b32.xlu0 %v1640, 64
        %v1664 = vpop.permute.xlu0 %1663
        %vm1673 = vcmask 589312
        %1674 = vst.msk [vmem:[#allocation5] sm:$0xff] %vm1673, %v1650
        %1675 = vst.msk [vmem:[#allocation5 + $0x8] sm:$0xff] %vm1673, %v1652
        %1676 = vst.msk [vmem:[#allocation5 + $0x10] sm:$0xff] %vm1673, %v1654
        %1677 = vst.msk [vmem:[#allocation5 + $0x18] sm:$0xff] %vm1673, %v1656
        %1678 = vst.msk [vmem:[#allocation5 + $0x20] sm:$0xff] %vm1673, %v1658
        %1679 = vst.msk [vmem:[#allocation5 + $0x28] sm:$0xff] %vm1673, %v1660
        %1680 = vst.msk [vmem:[#allocation5 + $0x30] sm:$0xff] %vm1673, %v1662
        %1681 = vst.msk [vmem:[#allocation5 + $0x38] sm:$0xff] %vm1673, %v1664
        %v1682 = vld [vmem:[#allocation5] sm:$0xff]
        %v1683 = vld [vmem:[#allocation5 + $0x8] sm:$0xff]
        %v1684 = vld [vmem:[#allocation5 + $0x10] sm:$0xff]
        %v1685 = vld [vmem:[#allocation5 + $0x18] sm:$0xff]
        %v1686 = vld [vmem:[#allocation5 + $0x20] sm:$0xff]
        %v1687 = vld [vmem:[#allocation5 + $0x28] sm:$0xff]
        %v1688 = vld [vmem:[#allocation5 + $0x30] sm:$0xff]
        %v1689 = vld [vmem:[#allocation5 + $0x38] sm:$0xff]
        %v1690 = vld [vmem:[%s6] sm:$0xff]
        %v1691 = vld [vmem:[%s6 + $0x8] sm:$0xff]
        %v1692 = vld [vmem:[%s6 + $0x10] sm:$0xff]
        %v1693 = vld [vmem:[%s6 + $0x18] sm:$0xff]
        %v1694 = vld [vmem:[%s6 + $0x20] sm:$0xff]
        %v1695 = vld [vmem:[%s6 + $0x28] sm:$0xff]
        %v1696 = vld [vmem:[%s6 + $0x30] sm:$0xff]
        %v1697 = vld [vmem:[%s6 + $0x38] sm:$0xff]
        %v1698 = vld [vmem:[%s6 + $0x40] sm:$0xff]
        %v1699 = vld [vmem:[%s7] sm:$0x1]
        %v1701 = vperm.slane %v1699, 0
        %vm1703 = vcmask 588800
        %v1705 = vsel %vm1703, %v1682, 0
        %v1708 = vsel %vm1703, %v1683, 0
        %v1711 = vsel %vm1703, %v1684, 0
        %v1714 = vsel %vm1703, %v1685, 0
        %v1717 = vsel %vm1703, %v1686, 0
        %v1720 = vsel %vm1703, %v1687, 0
        %v1723 = vsel %vm1703, %v1688, 0
        %v1726 = vsel %vm1703, %v1689, 0
        %1728 = vmatpush.msra.mxu0 0.0
        %1729 = vmatpush.msra.mxu0 0.0
        %1730 = vmatpush.msra.mxu0 0.0
        %1731 = vmatpush.msra.mxu0 0.0
        %1732 = vmatpush.msra.mxu0 0.0
        %1733 = vmatpush.msra.mxu0 0.0
        %1734 = vmatpush.msra.mxu0 0.0
        %1735 = vmatpush.msra.mxu0 %v1698
        %1736 = vmatpush.msra.mxu0 %v1697
        %1737 = vmatpush.msra.mxu0 %v1696
        %1738 = vmatpush.msra.mxu0 %v1695
        %1739 = vmatpush.msra.mxu0 %v1694
        %1740 = vmatpush.msra.mxu0 %v1693
        %1741 = vmatpush.msra.mxu0 %v1692
        %1742 = vmatpush.msra.mxu0 %v1691
        %1743 = vmatpush.msra.mxu0 %v1690
        %1744 = vmatmul.f32.gmra.mxu0 %v1705
        %v1745 = vpop.f32.mrf.mxu0
        %v1746 = vadd.f32 %v1701, %v1745
        %1747 = vmatmul.f32.gmra.mxu0 %v1708
        %v1748 = vpop.f32.mrf.mxu0
        %v1749 = vadd.f32 %v1701, %v1748
        %1750 = vmatmul.f32.gmra.mxu0 %v1711
        %v1751 = vpop.f32.mrf.mxu0
        %v1752 = vadd.f32 %v1701, %v1751
        %1753 = vmatmul.f32.gmra.mxu0 %v1714
        %v1754 = vpop.f32.mrf.mxu0
        %v1755 = vadd.f32 %v1701, %v1754
        %1756 = vmatmul.f32.gmra.mxu0 %v1717
        %v1757 = vpop.f32.mrf.mxu0
        %v1758 = vadd.f32 %v1701, %v1757
        %1759 = vmatmul.f32.gmra.mxu0 %v1720
        %v1760 = vpop.f32.mrf.mxu0
        %v1761 = vadd.f32 %v1701, %v1760
        %1762 = vmatmul.f32.gmra.mxu0 %v1723
        %v1763 = vpop.f32.mrf.mxu0
        %v1764 = vadd.f32 %v1701, %v1763
        %1765 = vmatmul.f32.gmra.mxu0 %v1726
        %v1766 = vpop.f32.mrf.mxu0
        %v1767 = vadd.f32 %v1701, %v1766
        %1768 = vdwg.mxu0
        %v1769 = vsub.f32 0.0, %v1746
        %v1770 = vsub.f32 0.0, %v1749
        %v1771 = vsub.f32 0.0, %v1752
        %v1772 = vsub.f32 0.0, %v1755
        %v1773 = vsub.f32 0.0, %v1758
        %v1774 = vsub.f32 0.0, %v1761
        %v1775 = vsub.f32 0.0, %v1764
        %v1776 = vsub.f32 0.0, %v1767
        %v1777 = vmul.f32 %v1769, 1.442695
        %v1778 = vpow.pop %v1777
        %v1779 = vmul.f32 %v1770, 1.442695
        %v1780 = vpow.pop %v1779
        %v1781 = vmul.f32 %v1771, 1.442695
        %v1782 = vpow.pop %v1781
        %v1783 = vmul.f32 %v1772, 1.442695
        %v1784 = vpow.pop %v1783
        %v1785 = vmul.f32 %v1773, 1.442695
        %v1786 = vpow.pop %v1785
        %v1787 = vmul.f32 %v1774, 1.442695
        %v1788 = vpow.pop %v1787
        %v1789 = vmul.f32 %v1775, 1.442695
        %v1790 = vpow.pop %v1789
        %v1791 = vmul.f32 %v1776, 1.442695
        %v1792 = vpow.pop %v1791
        %v1793 = vadd.f32 %v1778, 1.0
        %v1794 = vadd.f32 %v1780, 1.0
        %v1795 = vadd.f32 %v1782, 1.0
        %v1796 = vadd.f32 %v1784, 1.0
        %v1797 = vadd.f32 %v1786, 1.0
        %v1798 = vadd.f32 %v1788, 1.0
        %v1799 = vadd.f32 %v1790, 1.0
        %v1800 = vadd.f32 %v1792, 1.0
        %v1801 = vrcp.pop %v1793
        %v1802 = vmul.f32 %v1793, %v1801
        %v1803 = vsub.f32 1.0, %v1802
        %v1804 = vmul.f32 %v1801, %v1803
        %v1805 = vadd.f32 %v1801, %v1804
        %vm1806 = vweird.f32 %v1793
        %vm1807 = vweird.f32 %v1801
        %vm1808 = vmor %vm1806, %vm1807
        %v1809 = vsel %vm1808, %v1801, %v1805
        %v1810 = vand.u32 2147483647, %v1793
        %vm1811 = vcmp.eq.f32.partialorder %v1810, 8.507059e+37
        %v1812 = vand.u32 %v1793, 2147483648
        %v1813 = vor.u32 1.1754944e-38, %v1812
        %v1814 = vsel %vm1811, %v1813, %v1809
        %v1815 = vmul.f32 1.0, %v1814
        %v1816 = vrcp.pop %v1794
        %v1817 = vmul.f32 %v1794, %v1816
        %v1818 = vsub.f32 1.0, %v1817
        %v1819 = vmul.f32 %v1816, %v1818
        %v1820 = vadd.f32 %v1816, %v1819
        %vm1821 = vweird.f32 %v1794
        %vm1822 = vweird.f32 %v1816
        %vm1823 = vmor %vm1821, %vm1822
        %v1824 = vsel %vm1823, %v1816, %v1820
        %v1825 = vand.u32 2147483647, %v1794
        %vm1826 = vcmp.eq.f32.partialorder %v1825, 8.507059e+37
        %v1827 = vand.u32 %v1794, 2147483648
        %v1828 = vor.u32 1.1754944e-38, %v1827
        %v1829 = vsel %vm1826, %v1828, %v1824
        %v1830 = vmul.f32 1.0, %v1829
        %v1831 = vrcp.pop %v1795
        %v1832 = vmul.f32 %v1795, %v1831
        %v1833 = vsub.f32 1.0, %v1832
        %v1834 = vmul.f32 %v1831, %v1833
        %v1835 = vadd.f32 %v1831, %v1834
        %vm1836 = vweird.f32 %v1795
        %vm1837 = vweird.f32 %v1831
        %vm1838 = vmor %vm1836, %vm1837
        %v1839 = vsel %vm1838, %v1831, %v1835
        %v1840 = vand.u32 2147483647, %v1795
        %vm1841 = vcmp.eq.f32.partialorder %v1840, 8.507059e+37
        %v1842 = vand.u32 %v1795, 2147483648
        %v1843 = vor.u32 1.1754944e-38, %v1842
        %v1844 = vsel %vm1841, %v1843, %v1839
        %v1845 = vmul.f32 1.0, %v1844
        %v1846 = vrcp.pop %v1796
        %v1847 = vmul.f32 %v1796, %v1846
        %v1848 = vsub.f32 1.0, %v1847
        %v1849 = vmul.f32 %v1846, %v1848
        %v1850 = vadd.f32 %v1846, %v1849
        %vm1851 = vweird.f32 %v1796
        %vm1852 = vweird.f32 %v1846
        %vm1853 = vmor %vm1851, %vm1852
        %v1854 = vsel %vm1853, %v1846, %v1850
        %v1855 = vand.u32 2147483647, %v1796
        %vm1856 = vcmp.eq.f32.partialorder %v1855, 8.507059e+37
        %v1857 = vand.u32 %v1796, 2147483648
        %v1858 = vor.u32 1.1754944e-38, %v1857
        %v1859 = vsel %vm1856, %v1858, %v1854
        %v1860 = vmul.f32 1.0, %v1859
        %v1861 = vrcp.pop %v1797
        %v1862 = vmul.f32 %v1797, %v1861
        %v1863 = vsub.f32 1.0, %v1862
        %v1864 = vmul.f32 %v1861, %v1863
        %v1865 = vadd.f32 %v1861, %v1864
        %vm1866 = vweird.f32 %v1797
        %vm1867 = vweird.f32 %v1861
        %vm1868 = vmor %vm1866, %vm1867
        %v1869 = vsel %vm1868, %v1861, %v1865
        %v1870 = vand.u32 2147483647, %v1797
        %vm1871 = vcmp.eq.f32.partialorder %v1870, 8.507059e+37
        %v1872 = vand.u32 %v1797, 2147483648
        %v1873 = vor.u32 1.1754944e-38, %v1872
        %v1874 = vsel %vm1871, %v1873, %v1869
        %v1875 = vmul.f32 1.0, %v1874
        %v1876 = vrcp.pop %v1798
        %v1877 = vmul.f32 %v1798, %v1876
        %v1878 = vsub.f32 1.0, %v1877
        %v1879 = vmul.f32 %v1876, %v1878
        %v1880 = vadd.f32 %v1876, %v1879
        %vm1881 = vweird.f32 %v1798
        %vm1882 = vweird.f32 %v1876
        %vm1883 = vmor %vm1881, %vm1882
        %v1884 = vsel %vm1883, %v1876, %v1880
        %v1885 = vand.u32 2147483647, %v1798
        %vm1886 = vcmp.eq.f32.partialorder %v1885, 8.507059e+37
        %v1887 = vand.u32 %v1798, 2147483648
        %v1888 = vor.u32 1.1754944e-38, %v1887
        %v1889 = vsel %vm1886, %v1888, %v1884
        %v1890 = vmul.f32 1.0, %v1889
        %v1891 = vrcp.pop %v1799
        %v1892 = vmul.f32 %v1799, %v1891
        %v1893 = vsub.f32 1.0, %v1892
        %v1894 = vmul.f32 %v1891, %v1893
        %v1895 = vadd.f32 %v1891, %v1894
        %vm1896 = vweird.f32 %v1799
        %vm1897 = vweird.f32 %v1891
        %vm1898 = vmor %vm1896, %vm1897
        %v1899 = vsel %vm1898, %v1891, %v1895
        %v1900 = vand.u32 2147483647, %v1799
        %vm1901 = vcmp.eq.f32.partialorder %v1900, 8.507059e+37
        %v1902 = vand.u32 %v1799, 2147483648
        %v1903 = vor.u32 1.1754944e-38, %v1902
        %v1904 = vsel %vm1901, %v1903, %v1899
        %v1905 = vmul.f32 1.0, %v1904
        %v1906 = vrcp.pop %v1800
        %v1907 = vmul.f32 %v1800, %v1906
        %v1908 = vsub.f32 1.0, %v1907
        %v1909 = vmul.f32 %v1906, %v1908
        %v1910 = vadd.f32 %v1906, %v1909
        %vm1911 = vweird.f32 %v1800
        %vm1912 = vweird.f32 %v1906
        %vm1913 = vmor %vm1911, %vm1912
        %v1914 = vsel %vm1913, %v1906, %v1910
        %v1915 = vand.u32 2147483647, %v1800
        %vm1916 = vcmp.eq.f32.partialorder %v1915, 8.507059e+37
        %v1917 = vand.u32 %v1800, 2147483648
        %v1918 = vor.u32 1.1754944e-38, %v1917
        %v1919 = vsel %vm1916, %v1918, %v1914
        %v1920 = vmul.f32 1.0, %v1919
        %v1921 = vmul.f32 %v1746, %v1815
        %v1922 = vmul.f32 %v1749, %v1830
        %v1923 = vmul.f32 %v1752, %v1845
        %v1924 = vmul.f32 %v1755, %v1860
        %v1925 = vmul.f32 %v1758, %v1875
        %v1926 = vmul.f32 %v1761, %v1890
        %v1927 = vmul.f32 %v1764, %v1905
        %v1928 = vmul.f32 %v1767, %v1920
        %v1929 = vld [vmem:[%s8] sm:$0xf]
        %v1930 = vld [vmem:[%s9] sm:$0x1]
        %v1932 = vperm.slane %v1930, 0
        %v1935 = vsel %vm484, %v476, 0
        %v1938 = vsel %vm484, %v477, 0
        %v1941 = vsel %vm484, %v478, 0
        %v1944 = vsel %vm484, %v479, 0
        %v1947 = vsel %vm484, %v480, 0
        %v1950 = vsel %vm484, %v481, 0
        %v1953 = vsel %vm484, %v482, 0
        %v1956 = vsel %vm484, %v483, 0
        %v1959 = vsel %vm972, %v1929, 0
        %1961 = vmatpush.msra.mxu0 0.0
        %1962 = vmatpush.msra.mxu0 0.0
        %1963 = vmatpush.msra.mxu0 0.0
        %1964 = vmatpush.msra.mxu0 0.0
        %1965 = vmatpush.msra.mxu0 0.0
        %1966 = vmatpush.msra.mxu0 0.0
        %1967 = vmatpush.msra.mxu0 0.0
        %1968 = vmatpush.msra.mxu0 0.0
        %1969 = vmatpush.msra.mxu0 0.0
        %1970 = vmatpush.msra.mxu0 0.0
        %1971 = vmatpush.msra.mxu0 0.0
        %1972 = vmatpush.msra.mxu0 0.0
        %1973 = vmatpush.msra.mxu0 0.0
        %1974 = vmatpush.msra.mxu0 0.0
        %1975 = vmatpush.msra.mxu0 0.0
        %1976 = vmatpush.msra.mxu0 %v1959
        %1977 = vmatmul.f32.gmra.mxu0 %v1935
        %v1978 = vpop.f32.mrf.mxu0
        %v1979 = vadd.f32 %v1932, %v1978
        %1980 = vmatmul.f32.gmra.mxu0 %v1938
        %v1981 = vpop.f32.mrf.mxu0
        %v1982 = vadd.f32 %v1932, %v1981
        %1983 = vmatmul.f32.gmra.mxu0 %v1941
        %v1984 = vpop.f32.mrf.mxu0
        %v1985 = vadd.f32 %v1932, %v1984
        %1986 = vmatmul.f32.gmra.mxu0 %v1944
        %v1987 = vpop.f32.mrf.mxu0
        %v1988 = vadd.f32 %v1932, %v1987
        %1989 = vmatmul.f32.gmra.mxu0 %v1947
        %v1990 = vpop.f32.mrf.mxu0
        %v1991 = vadd.f32 %v1932, %v1990
        %1992 = vmatmul.f32.gmra.mxu0 %v1950
        %v1993 = vpop.f32.mrf.mxu0
        %v1994 = vadd.f32 %v1932, %v1993
        %1995 = vmatmul.f32.gmra.mxu0 %v1953
        %v1996 = vpop.f32.mrf.mxu0
        %v1997 = vadd.f32 %v1932, %v1996
        %1998 = vmatmul.f32.gmra.mxu0 %v1956
        %v1999 = vpop.f32.mrf.mxu0
        %v2000 = vadd.f32 %v1932, %v1999
        %2001 = vdwg.mxu0
        %v2002 = vadd.f32 %v1979, %v1921
        %v2003 = vadd.f32 %v1982, %v1922
        %v2004 = vadd.f32 %v1985, %v1923
        %v2005 = vadd.f32 %v1988, %v1924
        %v2006 = vadd.f32 %v1991, %v1925
        %v2007 = vadd.f32 %v1994, %v1926
        %v2008 = vadd.f32 %v1997, %v1927
        %v2009 = vadd.f32 %v2000, %v1928
        %2010 = vxpose.xlu0.b32.start [1/16] %v2002, 128
        %2011 = vxpose.xlu0.b32.cont [2/16] %v2003, 128
        %2012 = vxpose.xlu0.b32.cont [3/16] %v2004, 128
        %2013 = vxpose.xlu0.b32.cont [4/16] %v2005, 128
        %2014 = vxpose.xlu0.b32.cont [5/16] %v2006, 128
        %2015 = vxpose.xlu0.b32.cont [6/16] %v2007, 128
        %2016 = vxpose.xlu0.b32.cont [7/16] %v2008, 128
        %2017 = vxpose.xlu0.b32.cont [8/16] %v2009, 128
        %2018 = vxpose.xlu0.b32.cont [9/16] 0.0, 128
        %2019 = vxpose.xlu0.b32.cont [10/16] 0.0, 128
        %2020 = vxpose.xlu0.b32.cont [11/16] 0.0, 128
        %2021 = vxpose.xlu0.b32.cont [12/16] 0.0, 128
        %2022 = vxpose.xlu0.b32.cont [13/16] 0.0, 128
        %2023 = vxpose.xlu0.b32.cont [14/16] 0.0, 128
        %2024 = vxpose.xlu0.b32.cont [15/16] 0.0, 128
        %2025 = vxpose.xlu0.b32.end [16/16] 0.0, 128
        %v2026 = vpop.trf.xlu0
        %v2027 = vpop.trf.xlu0
        %v2028 = vpop.trf.xlu0
        %v2029 = vpop.trf.xlu0
        %v2030 = vpop.trf.xlu0
        %v2031 = vpop.trf.xlu0
        %v2032 = vpop.trf.xlu0
        %v2033 = vpop.trf.xlu0
        %v2034 = vpop.trf.xlu0
        %v2035 = vpop.trf.xlu0
        %v2036 = vpop.trf.xlu0
        %v2037 = vpop.trf.xlu0
        %v2038 = vpop.trf.xlu0
        %v2039 = vpop.trf.xlu0
        %v2040 = vpop.trf.xlu0
        %v2041 = vpop.trf.xlu0
        %vm2042 = vcmask 523264
        %2043 = vst.msk [vmem:[%s363] sm:$0xff] %vm2042, %v2026
        %s2044 = sand.u32 %s252, 1
        %s2045 = scalar_lea.sflag [#allocation7], %s2044
        %s2046 = sand.u32 %s252, 1
        %s2047 = smul.addr %s2046, 8
        %s2048 = scalar_lea.vmem [#allocation6], %s2047
        // Predicated region
        $region61: #{tpu_custom_call.1} parent=59 // pred_check
          %p2049 = pneg %p262
        $region62: #{tpu_custom_call.1} parent=59 // pred_check_branch
          %2051 = sbr.rel (%p2049) target = $region64
        $region63: #{tpu_custom_call.1} parent=59 // pred_region
          %2053 = vsyncadd %s2045, 0
          %s2054 = smul.addr %s24, 8
          %s2055 = scalar_lea.hbm %s10, %s2054
          %s2057 = sshll.u32 %s2048, 4
          %s2058 = int_to_ptr.vmem [resolvable:$true] %s2057
          %s2059 = sshll.u32 %s2055, 4
          %s2060 = int_to_ptr.hbm [resolvable:$true] %s2059
          %2062 = dma.vmem_to_hbm [thread:$0]  %s2058, 128, %s2060, %s2045
        $region64: #{tpu_custom_call.1} parent=59 // pred_fallthru
          _
      $region60: #{tpu_custom_call.1} parent=5 // pred_fallthru
        _
      %p2063 = scmp.le.s32.totalorder 2, %s19
      // Predicated region
      $region65: #{tpu_custom_call.1} parent=5 // pred_check
        %p2064 = pneg %p2063
      $region66: #{tpu_custom_call.1} parent=5 // pred_check_branch
        %2066 = sbr.rel (%p2064) target = $region68
      $region67: #{tpu_custom_call.1} parent=5 // pred_region
        %s2067 = ssub.s32 %s19, 2
        // Predicated region
        $region69: #{tpu_custom_call.1} parent=67 // pred_check
          %p2068 = pneg %p268
        $region70: #{tpu_custom_call.1} parent=67 // pred_check_branch
          %2070 = sbr.rel (%p2068) target = $region72
        $region71: #{tpu_custom_call.1} parent=67 // pred_region
          %s2071 = sand.u32 %s253, 1
          %s2072 = scalar_lea.sflag [#allocation7], %s2071
          %s2073 = sand.u32 %s253, 1
          %s2074 = smul.addr %s2073, 8
          %s2075 = scalar_lea.vmem [#allocation6], %s2074
          %2077 = dma.done %s2072, 128
        $region72: #{tpu_custom_call.1} parent=67 // pred_fallthru
          _
      $region68: #{tpu_custom_call.1} parent=5 // pred_fallthru
        _
    $region6: #{tpu_custom_call.1} parent=1 // loop_footer
      %s23 = sadd.s32 1, %s19
    $region7: #{tpu_custom_call.1} parent=1 // loop_footer_branch
      %18 = sbr.rel target = $region3
    $region8: #{tpu_custom_call.1} parent=1 // loop_exit
      _
    %2078 = vsyncpa [#allocation7], 1
    %s2079 = scalar_lea.sflag [#allocation7], 1
    %2080 = vsyncpa %s2079, 1

</llo_original>
